<compile_context>
chip_gen: v7x
topology: tpu7x:2x2x1
jax: 0.10.0
libtpu: 0.0.40
codegen_flags: <defaults>
</compile_context>

<pallas_src>
import functools

import jax
import jax.numpy as jnp
from jax.experimental import pallas as pl
from jax.experimental.pallas import tpu as pltpu


def _round_up(x, m):
    return (x + m - 1) // m * m


def _largest_divisor_leq(n, cap):
    for cand in range(min(n, cap), 0, -1):
        if n % cand == 0:
            return cand
    return 1


def _pad_gate_cols(w, H, Hp):
    """w: (rows, 4H), PyTorch gate order [i|f|g|o] packed along the last axis.
    Returns (rows, 4*Hp) with each gate block zero-padded to Hp lanes."""
    rows = w.shape[0]
    out = jnp.zeros((rows, 4 * Hp), w.dtype)
    for k in range(4):
        out = out.at[:, k * Hp:k * Hp + H].set(w[:, k * H:(k + 1) * H])
    return out


def lstm_regressor_kernel(x_ref, w_ih_ref, w_hh_ref, b_ref, w_out_ref,
                          b_out_ref, out_ref, h_ref, c_ref, *, hidden_pad):
    """One (batch-tile, time-chunk) grid step of the LSTM recurrence.

    x_ref:     (TC, TB, D)   time-major input chunk
    w_ih_ref:  (D, 4*Hp)     input->gates (pre-transposed, gate-padded)
    w_hh_ref:  (Hp, 4*Hp)    hidden->gates (pre-transposed, gate-padded)
    b_ref:     (1, 4*Hp)     b_ih + b_hh (gate-padded), f32
    w_out_ref: (1, Hp)       final Linear weight row (zero-padded), f32
    b_out_ref: (1, 1)        final Linear bias, f32
    out_ref:   (TB, 1)       regression output (written at the last chunk)
    h_ref/c_ref: (TB, Hp)    persistent f32 recurrent state (VMEM scratch)
    """
    Hp = hidden_pad
    TC, TB, D = x_ref.shape
    c_idx = pl.program_id(1)
    n_chunks = pl.num_programs(1)

    @pl.when(c_idx == 0)
    def _init():
        h_ref[...] = jnp.zeros_like(h_ref)
        c_ref[...] = jnp.zeros_like(c_ref)

    # Hoisted once per chunk (not per timestep).
    w_ih = w_ih_ref[...]                                      # (D, 4Hp)
    w_hh = w_hh_ref[...]                                      # (Hp, 4Hp)
    bias = jnp.broadcast_to(b_ref[...], (TB, 4 * Hp))         # (TB, 4Hp) f32

    # One big MXU matmul: input projection for every timestep in the chunk.
    x_chunk = x_ref[...].reshape(TC * TB, D)                  # TB % 8 == 0
    proj = jnp.dot(x_chunk, w_ih, preferred_element_type=jnp.float32)
    proj = proj.reshape(TC, TB, 4 * Hp)                       # (TC, TB, 4Hp) f32

    h = h_ref[...]                                            # (TB, Hp) f32
    c = c_ref[...]                                            # (TB, Hp) f32

    # Fully unrolled recurrence over the chunk (TC is a small static constant).
    for t in range(TC):
        gates = (proj[t]
                 + jnp.dot(h.astype(w_hh.dtype), w_hh,
                           preferred_element_type=jnp.float32)
                 + bias)                                      # (TB, 4Hp) f32
        # PyTorch gate order: input, forget, cell(g), output — Hp-aligned slices.
        i_g = jax.nn.sigmoid(gates[:, 0 * Hp:1 * Hp])
        f_g = jax.nn.sigmoid(gates[:, 1 * Hp:2 * Hp])
        g_g = jnp.tanh(gates[:, 2 * Hp:3 * Hp])
        o_g = jax.nn.sigmoid(gates[:, 3 * Hp:4 * Hp])
        c = f_g * c + i_g * g_g
        h = o_g * jnp.tanh(c)

    h_ref[...] = h
    c_ref[...] = c

    @pl.when(c_idx == n_chunks - 1)
    def _finish():
        # Final Linear (Hp -> 1) as VPU multiply + lane reduce (no 1-wide MXU pass).
        w_out = jnp.broadcast_to(w_out_ref[...], (TB, Hp))
        y = jnp.sum(h * w_out, axis=-1, keepdims=True) + b_out_ref[...]
        out_ref[...] = y.astype(out_ref.dtype)


def lstm_regressor_forward(x, params, *, compute_dtype=jnp.float32,
                           max_time_chunk=16, max_batch_tile=128):
    """x: (B, T, D) float32, batch_first like the PyTorch module. Returns (B,)."""
    B, T, D = x.shape
    H = params["w_hh"].shape[1]                  # w_hh: (4H, H)
    Hp = _round_up(H, 128)                       # lane-aligned gate blocks

    Bp = _round_up(B, 8)                         # sublane-aligned batch
    if Bp <= max_batch_tile:
        TB = Bp
    else:
        TB = Bp
        for cand in range(max_batch_tile, 7, -8):
            if Bp % cand == 0:
                TB = cand
                break
    TC = _largest_divisor_leq(T, max_time_chunk)

    # Time-major layout; D is tiny so this one-off pass over x is negligible
    # and buys clean leading-dim indexing inside the recurrence chunks.
    x_tm = jnp.transpose(x, (1, 0, 2)).astype(compute_dtype)          # (T, B, D)
    if Bp != B:
        x_tm = jnp.pad(x_tm, ((0, 0), (0, Bp - B), (0, 0)))           # (T, Bp, D)

    # Pre-transposed, gate-padded weights. Padded rows/cols are exact zeros,
    # so padded h/c columns stay 0 and do not perturb the real computation.
    w_ih_t = _pad_gate_cols(params["w_ih"].T, H, Hp).astype(compute_dtype)   # (D, 4Hp)
    w_hh_cols = _pad_gate_cols(params["w_hh"].T, H, Hp)                      # (H, 4Hp)
    w_hh_t = jnp.zeros((Hp, 4 * Hp), jnp.float32).at[:H, :].set(w_hh_cols)
    w_hh_t = w_hh_t.astype(compute_dtype)                                    # (Hp, 4Hp)
    b = _pad_gate_cols((params["b_ih"] + params["b_hh"]).reshape(1, 4 * H),
                       H, Hp).astype(jnp.float32)                            # (1, 4Hp)
    w_out = jnp.zeros((1, Hp), jnp.float32).at[:, :H].set(
        params["w_out"].reshape(1, H).astype(jnp.float32))                   # (1, Hp)
    b_out = params["b_out"].reshape(1, 1).astype(jnp.float32)                # (1, 1)

    grid = (Bp // TB, T // TC)

    out = pl.pallas_call(
        functools.partial(lstm_regressor_kernel, hidden_pad=Hp),
        out_shape=jax.ShapeDtypeStruct((Bp, 1), jnp.float32),
        grid_spec=pltpu.PrefetchScalarGridSpec(
            num_scalar_prefetch=0,
            grid=grid,
            in_specs=[
                pl.BlockSpec((TC, TB, D), lambda b_, c_: (c_, b_, 0)),   # x chunk
                pl.BlockSpec((D, 4 * Hp), lambda b_, c_: (0, 0)),        # w_ih
                pl.BlockSpec((Hp, 4 * Hp), lambda b_, c_: (0, 0)),       # w_hh
                pl.BlockSpec((1, 4 * Hp), lambda b_, c_: (0, 0)),        # bias
                pl.BlockSpec((1, Hp), lambda b_, c_: (0, 0)),            # w_out
                pl.BlockSpec((1, 1), lambda b_, c_: (0, 0)),             # b_out
            ],
            out_specs=pl.BlockSpec((TB, 1), lambda b_, c_: (b_, 0)),
            scratch_shapes=[
                pltpu.VMEM((TB, Hp), jnp.float32),   # h state
                pltpu.VMEM((TB, Hp), jnp.float32),   # c state
            ],
        ),
        compiler_params=pltpu.CompilerParams(
            dimension_semantics=("parallel", "arbitrary")),
    )(x_tm, w_ih_t, w_hh_t, b, w_out, b_out)

    return out[:B, 0]                                           # matches x.reshape(-1)


def lstm_regressor_reference(x, params):
    """Pure-JAX reference of the same forward pass (for correctness check)."""
    H = params["w_hh"].shape[1]
    B, T, D = x.shape
    h = jnp.zeros((B, H), jnp.float32)
    c = jnp.zeros((B, H), jnp.float32)
    for t in range(T):
        gates = (x[:, t, :] @ params["w_ih"].T + params["b_ih"]
                 + h @ params["w_hh"].T + params["b_hh"])
        i = jax.nn.sigmoid(gates[:, 0 * H:1 * H])
        f = jax.nn.sigmoid(gates[:, 1 * H:2 * H])
        g = jnp.tanh(gates[:, 2 * H:3 * H])
        o = jax.nn.sigmoid(gates[:, 3 * H:4 * H])
        c = f * c + i * g
        h = o * jnp.tanh(c)
    return (h @ params["w_out"].T + params["b_out"]).reshape(-1)


def init_params(key, input_size, hidden_size):
    """Deterministic init mimicking PyTorch's U(-1/sqrt(H), 1/sqrt(H))."""
    ks = jax.random.split(key, 6)
    s = 1.0 / jnp.sqrt(hidden_size)
    H4 = 4 * hidden_size
    return {
        "w_ih": jax.random.uniform(ks[0], (H4, input_size), jnp.float32, -s, s),
        "w_hh": jax.random.uniform(ks[1], (H4, hidden_size), jnp.float32, -s, s),
        "b_ih": jax.random.uniform(ks[2], (H4,), jnp.float32, -s, s),
        "b_hh": jax.random.uniform(ks[3], (H4,), jnp.float32, -s, s),
        "w_out": jax.random.uniform(ks[4], (1, hidden_size), jnp.float32, -s, s),
        "b_out": jax.random.uniform(ks[5], (1,), jnp.float32, -s, s),
    }


if __name__ == "__main__":
    key = jax.random.PRNGKey(0)
    k_x, k_p = jax.random.split(key)

    batch, seq, input_size, hidden_size = 8, 8, 4, 32
    x = jax.random.normal(k_x, (batch, seq, input_size), jnp.float32)
    params = init_params(k_p, input_size, hidden_size)

    # TODO(synk): training/eval utilities of RegressorBaseClass (optimizer step,
    # loss backward) are host-side PyTorch plumbing and are not kernelized.
    y = jax.block_until_ready(lstm_regressor_forward(x, params))
    y_ref = lstm_regressor_reference(x, params)

    assert y.shape == (batch,)
    assert jnp.allclose(y, y_ref, atol=1e-5, rtol=1e-5)
    print("KERNEL_OK")
</pallas_src>

<mosaic_0001>
module attributes {stable_mosaic.version = 11 : i64} {
  func.func @lstm_regressor_kernel(%arg0: i32, %arg1: i32, %arg2: memref<8x8x4xf32, #tpu.memory_space<vmem>>, %arg3: memref<4x512xf32, #tpu.memory_space<vmem>>, %arg4: memref<128x512xf32, #tpu.memory_space<vmem>>, %arg5: memref<1x512xf32, #tpu.memory_space<vmem>>, %arg6: memref<1x128xf32, #tpu.memory_space<vmem>>, %arg7: memref<1x1xf32, #tpu.memory_space<vmem>>, %arg8: memref<8x1xf32, #tpu.memory_space<vmem>>, %arg9: memref<8x128xf32, #tpu.memory_space<vmem>>, %arg10: memref<8x128xf32, #tpu.memory_space<vmem>>) attributes {dimension_semantics = [#tpu.dimension_semantics<parallel>, #tpu.dimension_semantics<arbitrary>], iteration_bounds = array<i64: 1, 1>, scalar_prefetch = 0 : i64, scratch_operands = 2 : i64, tpu.core_type = #tpu.core_type<tc>, window_params = [{transform_indices = @transform_0, window_bounds = array<i64: 8, 8, 4>}, {pipeline_mode = #tpu.pipeline_mode<synchronous>, transform_indices = @transform_1, window_bounds = array<i64: 4, 512>}, {pipeline_mode = #tpu.pipeline_mode<synchronous>, transform_indices = @transform_2, window_bounds = array<i64: 128, 512>}, {pipeline_mode = #tpu.pipeline_mode<synchronous>, transform_indices = @transform_3, window_bounds = array<i64: 1, 512>}, {pipeline_mode = #tpu.pipeline_mode<synchronous>, transform_indices = @transform_4, window_bounds = array<i64: 1, 128>}, {pipeline_mode = #tpu.pipeline_mode<synchronous>, transform_indices = @transform_5, window_bounds = array<i64: 1, 1>}, {transform_indices = @transform_6, window_bounds = array<i64: 8, 1>}]} {
    %c0_i32 = arith.constant 0 : i32
    %0 = arith.cmpi eq, %arg1, %c0_i32 : i32
    %1 = arith.extui %0 : i1 to i32
    %c0_i32_0 = arith.constant 0 : i32
    %2 = arith.cmpi ne, %1, %c0_i32_0 : i32
    scf.if %2 {
      %cst_51 = arith.constant 0.000000e+00 : f32
      %259 = vector.broadcast %cst_51 : f32 to vector<8x128xf32>
      %c0_52 = arith.constant 0 : index
      %c0_53 = arith.constant 0 : index
      %260 = vector.load %arg9[%c0_52, %c0_53] : memref<8x128xf32, #tpu.memory_space<vmem>>, vector<8x128xf32>
      tpu.vector_store %arg9[%c0_52, %c0_53], %259 {strides = array<i32>} : memref<8x128xf32, #tpu.memory_space<vmem>>, vector<8x128xf32>,
      %cst_54 = arith.constant 0.000000e+00 : f32
      %261 = vector.broadcast %cst_54 : f32 to vector<8x128xf32>
      %c0_55 = arith.constant 0 : index
      %c0_56 = arith.constant 0 : index
      %262 = vector.load %arg10[%c0_55, %c0_56] : memref<8x128xf32, #tpu.memory_space<vmem>>, vector<8x128xf32>
      tpu.vector_store %arg10[%c0_55, %c0_56], %261 {strides = array<i32>} : memref<8x128xf32, #tpu.memory_space<vmem>>, vector<8x128xf32>,
    } else {
    }
    %c0 = arith.constant 0 : index
    %c0_1 = arith.constant 0 : index
    %3 = vector.load %arg3[%c0, %c0_1] : memref<4x512xf32, #tpu.memory_space<vmem>>, vector<4x512xf32>
    %c0_2 = arith.constant 0 : index
    %c0_3 = arith.constant 0 : index
    %4 = vector.load %arg4[%c0_2, %c0_3] : memref<128x512xf32, #tpu.memory_space<vmem>>, vector<128x512xf32>
    %c0_4 = arith.constant 0 : index
    %c0_5 = arith.constant 0 : index
    %5 = vector.load %arg5[%c0_4, %c0_5] : memref<1x512xf32, #tpu.memory_space<vmem>>, vector<1x512xf32>
    %6 = vector.shape_cast %5 : vector<1x512xf32> to vector<1x512xf32>
    %7 = vector.broadcast %6 : vector<1x512xf32> to vector<8x512xf32>
    %c0_6 = arith.constant 0 : index
    %c0_7 = arith.constant 0 : index
    %c0_8 = arith.constant 0 : index
    %8 = vector.load %arg2[%c0_6, %c0_7, %c0_8] : memref<8x8x4xf32, #tpu.memory_space<vmem>>, vector<8x8x4xf32>
    %9 = vector.shape_cast %8 : vector<8x8x4xf32> to vector<64x4xf32>
    %cst = arith.constant dense<0.000000e+00> : vector<64x512xf32>
    %10 = tpu.matmul %9, %3, %cst {dimension_numbers = #tpu.dot_dimension_numbers<[1], [0], [0], [1], [0, 0, 1, 1], [], []>} : vector<64x4xf32>, vector<4x512xf32>, vector<64x512xf32> -> vector<64x512xf32>
    %11 = vector.shape_cast %10 : vector<64x512xf32> to vector<8x8x512xf32>
    %c0_9 = arith.constant 0 : index
    %c0_10 = arith.constant 0 : index
    %12 = vector.load %arg9[%c0_9, %c0_10] : memref<8x128xf32, #tpu.memory_space<vmem>>, vector<8x128xf32>
    %c0_11 = arith.constant 0 : index
    %c0_12 = arith.constant 0 : index
    %13 = vector.load %arg10[%c0_11, %c0_12] : memref<8x128xf32, #tpu.memory_space<vmem>>, vector<8x128xf32>
    %14 = vector.extract_strided_slice %11 {offsets = [0, 0, 0], sizes = [1, 8, 512], strides = [1, 1, 1]} : vector<8x8x512xf32> to vector<1x8x512xf32>
    %15 = vector.shape_cast %14 : vector<1x8x512xf32> to vector<8x512xf32>
    %cst_13 = arith.constant dense<0.000000e+00> : vector<8x512xf32>
    %16 = tpu.matmul %12, %4, %cst_13 {dimension_numbers = #tpu.dot_dimension_numbers<[1], [0], [0], [1], [0, 0, 1, 1], [], []>} : vector<8x128xf32>, vector<128x512xf32>, vector<8x512xf32> -> vector<8x512xf32>
    %17 = arith.addf %15, %16 : vector<8x512xf32>
    %18 = arith.addf %17, %7 : vector<8x512xf32>
    %19 = vector.extract_strided_slice %18 {offsets = [0, 0], sizes = [8, 128], strides = [1, 1]} : vector<8x512xf32> to vector<8x128xf32>
    %20 = arith.negf %19 : vector<8x128xf32>
    %21 = math.exp %20 : vector<8x128xf32>
    %cst_14 = arith.constant 1.000000e+00 : f32
    %22 = vector.broadcast %cst_14 : f32 to vector<8x128xf32>
    %23 = arith.addf %22, %21 : vector<8x128xf32>
    %24 = arith.divf %22, %23 : vector<8x128xf32>
    %25 = vector.extract_strided_slice %18 {offsets = [0, 128], sizes = [8, 128], strides = [1, 1]} : vector<8x512xf32> to vector<8x128xf32>
    %26 = arith.negf %25 : vector<8x128xf32>
    %27 = math.exp %26 : vector<8x128xf32>
    %cst_15 = arith.constant 1.000000e+00 : f32
    %28 = vector.broadcast %cst_15 : f32 to vector<8x128xf32>
    %29 = arith.addf %28, %27 : vector<8x128xf32>
    %30 = arith.divf %28, %29 : vector<8x128xf32>
    %31 = vector.extract_strided_slice %18 {offsets = [0, 256], sizes = [8, 128], strides = [1, 1]} : vector<8x512xf32> to vector<8x128xf32>
    %32 = math.tanh %31 : vector<8x128xf32>
    %33 = vector.extract_strided_slice %18 {offsets = [0, 384], sizes = [8, 128], strides = [1, 1]} : vector<8x512xf32> to vector<8x128xf32>
    %34 = arith.negf %33 : vector<8x128xf32>
    %35 = math.exp %34 : vector<8x128xf32>
    %cst_16 = arith.constant 1.000000e+00 : f32
    %36 = vector.broadcast %cst_16 : f32 to vector<8x128xf32>
    %37 = arith.addf %36, %35 : vector<8x128xf32>
    %38 = arith.divf %36, %37 : vector<8x128xf32>
    %39 = arith.mulf %30, %13 : vector<8x128xf32>
    %40 = arith.mulf %24, %32 : vector<8x128xf32>
    %41 = arith.addf %39, %40 : vector<8x128xf32>
    %42 = math.tanh %41 : vector<8x128xf32>
    %43 = arith.mulf %38, %42 : vector<8x128xf32>
    %44 = vector.extract_strided_slice %11 {offsets = [1, 0, 0], sizes = [1, 8, 512], strides = [1, 1, 1]} : vector<8x8x512xf32> to vector<1x8x512xf32>
    %45 = vector.shape_cast %44 : vector<1x8x512xf32> to vector<8x512xf32>
    %cst_17 = arith.constant dense<0.000000e+00> : vector<8x512xf32>
    %46 = tpu.matmul %43, %4, %cst_17 {dimension_numbers = #tpu.dot_dimension_numbers<[1], [0], [0], [1], [0, 0, 1, 1], [], []>} : vector<8x128xf32>, vector<128x512xf32>, vector<8x512xf32> -> vector<8x512xf32>
    %47 = arith.addf %45, %46 : vector<8x512xf32>
    %48 = arith.addf %47, %7 : vector<8x512xf32>
    %49 = vector.extract_strided_slice %48 {offsets = [0, 0], sizes = [8, 128], strides = [1, 1]} : vector<8x512xf32> to vector<8x128xf32>
    %50 = arith.negf %49 : vector<8x128xf32>
    %51 = math.exp %50 : vector<8x128xf32>
    %cst_18 = arith.constant 1.000000e+00 : f32
    %52 = vector.broadcast %cst_18 : f32 to vector<8x128xf32>
    %53 = arith.addf %52, %51 : vector<8x128xf32>
    %54 = arith.divf %52, %53 : vector<8x128xf32>
    %55 = vector.extract_strided_slice %48 {offsets = [0, 128], sizes = [8, 128], strides = [1, 1]} : vector<8x512xf32> to vector<8x128xf32>
    %56 = arith.negf %55 : vector<8x128xf32>
    %57 = math.exp %56 : vector<8x128xf32>
    %cst_19 = arith.constant 1.000000e+00 : f32
    %58 = vector.broadcast %cst_19 : f32 to vector<8x128xf32>
    %59 = arith.addf %58, %57 : vector<8x128xf32>
    %60 = arith.divf %58, %59 : vector<8x128xf32>
    %61 = vector.extract_strided_slice %48 {offsets = [0, 256], sizes = [8, 128], strides = [1, 1]} : vector<8x512xf32> to vector<8x128xf32>
    %62 = math.tanh %61 : vector<8x128xf32>
    %63 = vector.extract_strided_slice %48 {offsets = [0, 384], sizes = [8, 128], strides = [1, 1]} : vector<8x512xf32> to vector<8x128xf32>
    %64 = arith.negf %63 : vector<8x128xf32>
    %65 = math.exp %64 : vector<8x128xf32>
    %cst_20 = arith.constant 1.000000e+00 : f32
    %66 = vector.broadcast %cst_20 : f32 to vector<8x128xf32>
    %67 = arith.addf %66, %65 : vector<8x128xf32>
    %68 = arith.divf %66, %67 : vector<8x128xf32>
    %69 = arith.mulf %60, %41 : vector<8x128xf32>
    %70 = arith.mulf %54, %62 : vector<8x128xf32>
    %71 = arith.addf %69, %70 : vector<8x128xf32>
    %72 = math.tanh %71 : vector<8x128xf32>
    %73 = arith.mulf %68, %72 : vector<8x128xf32>
    %74 = vector.extract_strided_slice %11 {offsets = [2, 0, 0], sizes = [1, 8, 512], strides = [1, 1, 1]} : vector<8x8x512xf32> to vector<1x8x512xf32>
    %75 = vector.shape_cast %74 : vector<1x8x512xf32> to vector<8x512xf32>
    %cst_21 = arith.constant dense<0.000000e+00> : vector<8x512xf32>
    %76 = tpu.matmul %73, %4, %cst_21 {dimension_numbers = #tpu.dot_dimension_numbers<[1], [0], [0], [1], [0, 0, 1, 1], [], []>} : vector<8x128xf32>, vector<128x512xf32>, vector<8x512xf32> -> vector<8x512xf32>
    %77 = arith.addf %75, %76 : vector<8x512xf32>
    %78 = arith.addf %77, %7 : vector<8x512xf32>
    %79 = vector.extract_strided_slice %78 {offsets = [0, 0], sizes = [8, 128], strides = [1, 1]} : vector<8x512xf32> to vector<8x128xf32>
    %80 = arith.negf %79 : vector<8x128xf32>
    %81 = math.exp %80 : vector<8x128xf32>
    %cst_22 = arith.constant 1.000000e+00 : f32
    %82 = vector.broadcast %cst_22 : f32 to vector<8x128xf32>
    %83 = arith.addf %82, %81 : vector<8x128xf32>
    %84 = arith.divf %82, %83 : vector<8x128xf32>
    %85 = vector.extract_strided_slice %78 {offsets = [0, 128], sizes = [8, 128], strides = [1, 1]} : vector<8x512xf32> to vector<8x128xf32>
    %86 = arith.negf %85 : vector<8x128xf32>
    %87 = math.exp %86 : vector<8x128xf32>
    %cst_23 = arith.constant 1.000000e+00 : f32
    %88 = vector.broadcast %cst_23 : f32 to vector<8x128xf32>
    %89 = arith.addf %88, %87 : vector<8x128xf32>
    %90 = arith.divf %88, %89 : vector<8x128xf32>
    %91 = vector.extract_strided_slice %78 {offsets = [0, 256], sizes = [8, 128], strides = [1, 1]} : vector<8x512xf32> to vector<8x128xf32>
    %92 = math.tanh %91 : vector<8x128xf32>
    %93 = vector.extract_strided_slice %78 {offsets = [0, 384], sizes = [8, 128], strides = [1, 1]} : vector<8x512xf32> to vector<8x128xf32>
    %94 = arith.negf %93 : vector<8x128xf32>
    %95 = math.exp %94 : vector<8x128xf32>
    %cst_24 = arith.constant 1.000000e+00 : f32
    %96 = vector.broadcast %cst_24 : f32 to vector<8x128xf32>
    %97 = arith.addf %96, %95 : vector<8x128xf32>
    %98 = arith.divf %96, %97 : vector<8x128xf32>
    %99 = arith.mulf %90, %71 : vector<8x128xf32>
    %100 = arith.mulf %84, %92 : vector<8x128xf32>
    %101 = arith.addf %99, %100 : vector<8x128xf32>
    %102 = math.tanh %101 : vector<8x128xf32>
    %103 = arith.mulf %98, %102 : vector<8x128xf32>
    %104 = vector.extract_strided_slice %11 {offsets = [3, 0, 0], sizes = [1, 8, 512], strides = [1, 1, 1]} : vector<8x8x512xf32> to vector<1x8x512xf32>
    %105 = vector.shape_cast %104 : vector<1x8x512xf32> to vector<8x512xf32>
    %cst_25 = arith.constant dense<0.000000e+00> : vector<8x512xf32>
    %106 = tpu.matmul %103, %4, %cst_25 {dimension_numbers = #tpu.dot_dimension_numbers<[1], [0], [0], [1], [0, 0, 1, 1], [], []>} : vector<8x128xf32>, vector<128x512xf32>, vector<8x512xf32> -> vector<8x512xf32>
    %107 = arith.addf %105, %106 : vector<8x512xf32>
    %108 = arith.addf %107, %7 : vector<8x512xf32>
    %109 = vector.extract_strided_slice %108 {offsets = [0, 0], sizes = [8, 128], strides = [1, 1]} : vector<8x512xf32> to vector<8x128xf32>
    %110 = arith.negf %109 : vector<8x128xf32>
    %111 = math.exp %110 : vector<8x128xf32>
    %cst_26 = arith.constant 1.000000e+00 : f32
    %112 = vector.broadcast %cst_26 : f32 to vector<8x128xf32>
    %113 = arith.addf %112, %111 : vector<8x128xf32>
    %114 = arith.divf %112, %113 : vector<8x128xf32>
    %115 = vector.extract_strided_slice %108 {offsets = [0, 128], sizes = [8, 128], strides = [1, 1]} : vector<8x512xf32> to vector<8x128xf32>
    %116 = arith.negf %115 : vector<8x128xf32>
    %117 = math.exp %116 : vector<8x128xf32>
    %cst_27 = arith.constant 1.000000e+00 : f32
    %118 = vector.broadcast %cst_27 : f32 to vector<8x128xf32>
    %119 = arith.addf %118, %117 : vector<8x128xf32>
    %120 = arith.divf %118, %119 : vector<8x128xf32>
    %121 = vector.extract_strided_slice %108 {offsets = [0, 256], sizes = [8, 128], strides = [1, 1]} : vector<8x512xf32> to vector<8x128xf32>
    %122 = math.tanh %121 : vector<8x128xf32>
    %123 = vector.extract_strided_slice %108 {offsets = [0, 384], sizes = [8, 128], strides = [1, 1]} : vector<8x512xf32> to vector<8x128xf32>
    %124 = arith.negf %123 : vector<8x128xf32>
    %125 = math.exp %124 : vector<8x128xf32>
    %cst_28 = arith.constant 1.000000e+00 : f32
    %126 = vector.broadcast %cst_28 : f32 to vector<8x128xf32>
    %127 = arith.addf %126, %125 : vector<8x128xf32>
    %128 = arith.divf %126, %127 : vector<8x128xf32>
    %129 = arith.mulf %120, %101 : vector<8x128xf32>
    %130 = arith.mulf %114, %122 : vector<8x128xf32>
    %131 = arith.addf %129, %130 : vector<8x128xf32>
    %132 = math.tanh %131 : vector<8x128xf32>
    %133 = arith.mulf %128, %132 : vector<8x128xf32>
    %134 = vector.extract_strided_slice %11 {offsets = [4, 0, 0], sizes = [1, 8, 512], strides = [1, 1, 1]} : vector<8x8x512xf32> to vector<1x8x512xf32>
    %135 = vector.shape_cast %134 : vector<1x8x512xf32> to vector<8x512xf32>
    %cst_29 = arith.constant dense<0.000000e+00> : vector<8x512xf32>
    %136 = tpu.matmul %133, %4, %cst_29 {dimension_numbers = #tpu.dot_dimension_numbers<[1], [0], [0], [1], [0, 0, 1, 1], [], []>} : vector<8x128xf32>, vector<128x512xf32>, vector<8x512xf32> -> vector<8x512xf32>
    %137 = arith.addf %135, %136 : vector<8x512xf32>
    %138 = arith.addf %137, %7 : vector<8x512xf32>
    %139 = vector.extract_strided_slice %138 {offsets = [0, 0], sizes = [8, 128], strides = [1, 1]} : vector<8x512xf32> to vector<8x128xf32>
    %140 = arith.negf %139 : vector<8x128xf32>
    %141 = math.exp %140 : vector<8x128xf32>
    %cst_30 = arith.constant 1.000000e+00 : f32
    %142 = vector.broadcast %cst_30 : f32 to vector<8x128xf32>
    %143 = arith.addf %142, %141 : vector<8x128xf32>
    %144 = arith.divf %142, %143 : vector<8x128xf32>
    %145 = vector.extract_strided_slice %138 {offsets = [0, 128], sizes = [8, 128], strides = [1, 1]} : vector<8x512xf32> to vector<8x128xf32>
    %146 = arith.negf %145 : vector<8x128xf32>
    %147 = math.exp %146 : vector<8x128xf32>
    %cst_31 = arith.constant 1.000000e+00 : f32
    %148 = vector.broadcast %cst_31 : f32 to vector<8x128xf32>
    %149 = arith.addf %148, %147 : vector<8x128xf32>
    %150 = arith.divf %148, %149 : vector<8x128xf32>
    %151 = vector.extract_strided_slice %138 {offsets = [0, 256], sizes = [8, 128], strides = [1, 1]} : vector<8x512xf32> to vector<8x128xf32>
    %152 = math.tanh %151 : vector<8x128xf32>
    %153 = vector.extract_strided_slice %138 {offsets = [0, 384], sizes = [8, 128], strides = [1, 1]} : vector<8x512xf32> to vector<8x128xf32>
    %154 = arith.negf %153 : vector<8x128xf32>
    %155 = math.exp %154 : vector<8x128xf32>
    %cst_32 = arith.constant 1.000000e+00 : f32
    %156 = vector.broadcast %cst_32 : f32 to vector<8x128xf32>
    %157 = arith.addf %156, %155 : vector<8x128xf32>
    %158 = arith.divf %156, %157 : vector<8x128xf32>
    %159 = arith.mulf %150, %131 : vector<8x128xf32>
    %160 = arith.mulf %144, %152 : vector<8x128xf32>
    %161 = arith.addf %159, %160 : vector<8x128xf32>
    %162 = math.tanh %161 : vector<8x128xf32>
    %163 = arith.mulf %158, %162 : vector<8x128xf32>
    %164 = vector.extract_strided_slice %11 {offsets = [5, 0, 0], sizes = [1, 8, 512], strides = [1, 1, 1]} : vector<8x8x512xf32> to vector<1x8x512xf32>
    %165 = vector.shape_cast %164 : vector<1x8x512xf32> to vector<8x512xf32>
    %cst_33 = arith.constant dense<0.000000e+00> : vector<8x512xf32>
    %166 = tpu.matmul %163, %4, %cst_33 {dimension_numbers = #tpu.dot_dimension_numbers<[1], [0], [0], [1], [0, 0, 1, 1], [], []>} : vector<8x128xf32>, vector<128x512xf32>, vector<8x512xf32> -> vector<8x512xf32>
    %167 = arith.addf %165, %166 : vector<8x512xf32>
    %168 = arith.addf %167, %7 : vector<8x512xf32>
    %169 = vector.extract_strided_slice %168 {offsets = [0, 0], sizes = [8, 128], strides = [1, 1]} : vector<8x512xf32> to vector<8x128xf32>
    %170 = arith.negf %169 : vector<8x128xf32>
    %171 = math.exp %170 : vector<8x128xf32>
    %cst_34 = arith.constant 1.000000e+00 : f32
    %172 = vector.broadcast %cst_34 : f32 to vector<8x128xf32>
    %173 = arith.addf %172, %171 : vector<8x128xf32>
    %174 = arith.divf %172, %173 : vector<8x128xf32>
    %175 = vector.extract_strided_slice %168 {offsets = [0, 128], sizes = [8, 128], strides = [1, 1]} : vector<8x512xf32> to vector<8x128xf32>
    %176 = arith.negf %175 : vector<8x128xf32>
    %177 = math.exp %176 : vector<8x128xf32>
    %cst_35 = arith.constant 1.000000e+00 : f32
    %178 = vector.broadcast %cst_35 : f32 to vector<8x128xf32>
    %179 = arith.addf %178, %177 : vector<8x128xf32>
    %180 = arith.divf %178, %179 : vector<8x128xf32>
    %181 = vector.extract_strided_slice %168 {offsets = [0, 256], sizes = [8, 128], strides = [1, 1]} : vector<8x512xf32> to vector<8x128xf32>
    %182 = math.tanh %181 : vector<8x128xf32>
    %183 = vector.extract_strided_slice %168 {offsets = [0, 384], sizes = [8, 128], strides = [1, 1]} : vector<8x512xf32> to vector<8x128xf32>
    %184 = arith.negf %183 : vector<8x128xf32>
    %185 = math.exp %184 : vector<8x128xf32>
    %cst_36 = arith.constant 1.000000e+00 : f32
    %186 = vector.broadcast %cst_36 : f32 to vector<8x128xf32>
    %187 = arith.addf %186, %185 : vector<8x128xf32>
    %188 = arith.divf %186, %187 : vector<8x128xf32>
    %189 = arith.mulf %180, %161 : vector<8x128xf32>
    %190 = arith.mulf %174, %182 : vector<8x128xf32>
    %191 = arith.addf %189, %190 : vector<8x128xf32>
    %192 = math.tanh %191 : vector<8x128xf32>
    %193 = arith.mulf %188, %192 : vector<8x128xf32>
    %194 = vector.extract_strided_slice %11 {offsets = [6, 0, 0], sizes = [1, 8, 512], strides = [1, 1, 1]} : vector<8x8x512xf32> to vector<1x8x512xf32>
    %195 = vector.shape_cast %194 : vector<1x8x512xf32> to vector<8x512xf32>
    %cst_37 = arith.constant dense<0.000000e+00> : vector<8x512xf32>
    %196 = tpu.matmul %193, %4, %cst_37 {dimension_numbers = #tpu.dot_dimension_numbers<[1], [0], [0], [1], [0, 0, 1, 1], [], []>} : vector<8x128xf32>, vector<128x512xf32>, vector<8x512xf32> -> vector<8x512xf32>
    %197 = arith.addf %195, %196 : vector<8x512xf32>
    %198 = arith.addf %197, %7 : vector<8x512xf32>
    %199 = vector.extract_strided_slice %198 {offsets = [0, 0], sizes = [8, 128], strides = [1, 1]} : vector<8x512xf32> to vector<8x128xf32>
    %200 = arith.negf %199 : vector<8x128xf32>
    %201 = math.exp %200 : vector<8x128xf32>
    %cst_38 = arith.constant 1.000000e+00 : f32
    %202 = vector.broadcast %cst_38 : f32 to vector<8x128xf32>
    %203 = arith.addf %202, %201 : vector<8x128xf32>
    %204 = arith.divf %202, %203 : vector<8x128xf32>
    %205 = vector.extract_strided_slice %198 {offsets = [0, 128], sizes = [8, 128], strides = [1, 1]} : vector<8x512xf32> to vector<8x128xf32>
    %206 = arith.negf %205 : vector<8x128xf32>
    %207 = math.exp %206 : vector<8x128xf32>
    %cst_39 = arith.constant 1.000000e+00 : f32
    %208 = vector.broadcast %cst_39 : f32 to vector<8x128xf32>
    %209 = arith.addf %208, %207 : vector<8x128xf32>
    %210 = arith.divf %208, %209 : vector<8x128xf32>
    %211 = vector.extract_strided_slice %198 {offsets = [0, 256], sizes = [8, 128], strides = [1, 1]} : vector<8x512xf32> to vector<8x128xf32>
    %212 = math.tanh %211 : vector<8x128xf32>
    %213 = vector.extract_strided_slice %198 {offsets = [0, 384], sizes = [8, 128], strides = [1, 1]} : vector<8x512xf32> to vector<8x128xf32>
    %214 = arith.negf %213 : vector<8x128xf32>
    %215 = math.exp %214 : vector<8x128xf32>
    %cst_40 = arith.constant 1.000000e+00 : f32
    %216 = vector.broadcast %cst_40 : f32 to vector<8x128xf32>
    %217 = arith.addf %216, %215 : vector<8x128xf32>
    %218 = arith.divf %216, %217 : vector<8x128xf32>
    %219 = arith.mulf %210, %191 : vector<8x128xf32>
    %220 = arith.mulf %204, %212 : vector<8x128xf32>
    %221 = arith.addf %219, %220 : vector<8x128xf32>
    %222 = math.tanh %221 : vector<8x128xf32>
    %223 = arith.mulf %218, %222 : vector<8x128xf32>
    %224 = vector.extract_strided_slice %11 {offsets = [7, 0, 0], sizes = [1, 8, 512], strides = [1, 1, 1]} : vector<8x8x512xf32> to vector<1x8x512xf32>
    %225 = vector.shape_cast %224 : vector<1x8x512xf32> to vector<8x512xf32>
    %cst_41 = arith.constant dense<0.000000e+00> : vector<8x512xf32>
    %226 = tpu.matmul %223, %4, %cst_41 {dimension_numbers = #tpu.dot_dimension_numbers<[1], [0], [0], [1], [0, 0, 1, 1], [], []>} : vector<8x128xf32>, vector<128x512xf32>, vector<8x512xf32> -> vector<8x512xf32>
    %227 = arith.addf %225, %226 : vector<8x512xf32>
    %228 = arith.addf %227, %7 : vector<8x512xf32>
    %229 = vector.extract_strided_slice %228 {offsets = [0, 0], sizes = [8, 128], strides = [1, 1]} : vector<8x512xf32> to vector<8x128xf32>
    %230 = arith.negf %229 : vector<8x128xf32>
    %231 = math.exp %230 : vector<8x128xf32>
    %cst_42 = arith.constant 1.000000e+00 : f32
    %232 = vector.broadcast %cst_42 : f32 to vector<8x128xf32>
    %233 = arith.addf %232, %231 : vector<8x128xf32>
    %234 = arith.divf %232, %233 : vector<8x128xf32>
    %235 = vector.extract_strided_slice %228 {offsets = [0, 128], sizes = [8, 128], strides = [1, 1]} : vector<8x512xf32> to vector<8x128xf32>
    %236 = arith.negf %235 : vector<8x128xf32>
    %237 = math.exp %236 : vector<8x128xf32>
    %cst_43 = arith.constant 1.000000e+00 : f32
    %238 = vector.broadcast %cst_43 : f32 to vector<8x128xf32>
    %239 = arith.addf %238, %237 : vector<8x128xf32>
    %240 = arith.divf %238, %239 : vector<8x128xf32>
    %241 = vector.extract_strided_slice %228 {offsets = [0, 256], sizes = [8, 128], strides = [1, 1]} : vector<8x512xf32> to vector<8x128xf32>
    %242 = math.tanh %241 : vector<8x128xf32>
    %243 = vector.extract_strided_slice %228 {offsets = [0, 384], sizes = [8, 128], strides = [1, 1]} : vector<8x512xf32> to vector<8x128xf32>
    %244 = arith.negf %243 : vector<8x128xf32>
    %245 = math.exp %244 : vector<8x128xf32>
    %cst_44 = arith.constant 1.000000e+00 : f32
    %246 = vector.broadcast %cst_44 : f32 to vector<8x128xf32>
    %247 = arith.addf %246, %245 : vector<8x128xf32>
    %248 = arith.divf %246, %247 : vector<8x128xf32>
    %249 = arith.mulf %240, %221 : vector<8x128xf32>
    %250 = arith.mulf %234, %242 : vector<8x128xf32>
    %251 = arith.addf %249, %250 : vector<8x128xf32>
    %252 = math.tanh %251 : vector<8x128xf32>
    %253 = arith.mulf %248, %252 : vector<8x128xf32>
    %c0_45 = arith.constant 0 : index
    %c0_46 = arith.constant 0 : index
    %254 = vector.load %arg9[%c0_45, %c0_46] : memref<8x128xf32, #tpu.memory_space<vmem>>, vector<8x128xf32>
    tpu.vector_store %arg9[%c0_45, %c0_46], %253 {strides = array<i32>} : memref<8x128xf32, #tpu.memory_space<vmem>>, vector<8x128xf32>,
    %c0_47 = arith.constant 0 : index
    %c0_48 = arith.constant 0 : index
    %255 = vector.load %arg10[%c0_47, %c0_48] : memref<8x128xf32, #tpu.memory_space<vmem>>, vector<8x128xf32>
    tpu.vector_store %arg10[%c0_47, %c0_48], %251 {strides = array<i32>} : memref<8x128xf32, #tpu.memory_space<vmem>>, vector<8x128xf32>,
    %c0_i32_49 = arith.constant 0 : i32
    %256 = arith.cmpi eq, %arg1, %c0_i32_49 : i32
    %257 = arith.extui %256 : i1 to i32
    %c0_i32_50 = arith.constant 0 : i32
    %258 = arith.cmpi ne, %257, %c0_i32_50 : i32
    scf.if %258 {
      %c0_51 = arith.constant 0 : index
      %c0_52 = arith.constant 0 : index
      %259 = vector.load %arg6[%c0_51, %c0_52] : memref<1x128xf32, #tpu.memory_space<vmem>>, vector<1x128xf32>
      %260 = vector.shape_cast %259 : vector<1x128xf32> to vector<1x128xf32>
      %261 = vector.broadcast %260 : vector<1x128xf32> to vector<8x128xf32>
      %262 = arith.mulf %253, %261 : vector<8x128xf32>
      %cst_53 = arith.constant dense<0.000000e+00> : vector<8xf32>
      %263 = vector.multi_reduction <add>, %262, %cst_53 [1] : vector<8x128xf32> to vector<8xf32>
      %264 = vector.shape_cast %263 : vector<8xf32> to vector<8x1xf32>
      %c0_54 = arith.constant 0 : index
      %c0_55 = arith.constant 0 : index
      %265 = vector.load %arg7[%c0_54, %c0_55] : memref<1x1xf32, #tpu.memory_space<vmem>>, vector<1x1xf32>
      %266 = vector.broadcast %265 : vector<1x1xf32> to vector<8x1xf32>
      %267 = arith.addf %264, %266 : vector<8x1xf32>
      %c0_56 = arith.constant 0 : index
      %c0_57 = arith.constant 0 : index
      %268 = vector.load %arg8[%c0_56, %c0_57] : memref<8x1xf32, #tpu.memory_space<vmem>>, vector<8x1xf32>
      tpu.vector_store %arg8[%c0_56, %c0_57], %267 {strides = array<i32>} : memref<8x1xf32, #tpu.memory_space<vmem>>, vector<8x1xf32>,
    } else {
    }
    return
  }
  func.func @transform_0(%arg0: i32, %arg1: i32) -> (i32, i32, i32) {
    %c0_i32 = arith.constant 0 : i32
    %c0_i32_0 = arith.constant 0 : i32
    return %arg1, %arg0, %c0_i32 : i32, i32, i32
  }
  func.func @transform_1(%arg0: i32, %arg1: i32) -> (i32, i32) {
    %c0_i32 = arith.constant 0 : i32
    %c0_i32_0 = arith.constant 0 : i32
    %c0_i32_1 = arith.constant 0 : i32
    return %c0_i32, %c0_i32_0 : i32, i32
  }
  func.func @transform_2(%arg0: i32, %arg1: i32) -> (i32, i32) {
    %c0_i32 = arith.constant 0 : i32
    %c0_i32_0 = arith.constant 0 : i32
    %c0_i32_1 = arith.constant 0 : i32
    return %c0_i32, %c0_i32_0 : i32, i32
  }
  func.func @transform_3(%arg0: i32, %arg1: i32) -> (i32, i32) {
    %c0_i32 = arith.constant 0 : i32
    %c0_i32_0 = arith.constant 0 : i32
    %c0_i32_1 = arith.constant 0 : i32
    return %c0_i32, %c0_i32_0 : i32, i32
  }
  func.func @transform_4(%arg0: i32, %arg1: i32) -> (i32, i32) {
    %c0_i32 = arith.constant 0 : i32
    %c0_i32_0 = arith.constant 0 : i32
    %c0_i32_1 = arith.constant 0 : i32
    return %c0_i32, %c0_i32_0 : i32, i32
  }
  func.func @transform_5(%arg0: i32, %arg1: i32) -> (i32, i32) {
    %c0_i32 = arith.constant 0 : i32
    %c0_i32_0 = arith.constant 0 : i32
    %c0_i32_1 = arith.constant 0 : i32
    return %c0_i32, %c0_i32_0 : i32, i32
  }
  func.func @transform_6(%arg0: i32, %arg1: i32) -> (i32, i32) {
    %c0_i32 = arith.constant 0 : i32
    %c0_i32_0 = arith.constant 0 : i32
    return %arg0, %c0_i32 : i32, i32
  }
}

</mosaic_0001>

<llo_original>
// kernel: tpu_custom_call.1
$region0: #{tpu_custom_call.1}
  #allocation0 [shape = 'u32[]', space=smem, size = 0x4, offset = 0x4, fixed_abs, tag = 'smem constant byte address 0x4 - core index']
  #allocation1 [shape = 'u32[144,128]{1,0:T(1,128)}', space=vmem, size = 0x12000, scoped, tag = 'internal scratch']
  #allocation2 [shape = 'f32[8,128]{1,0:T(8,128)}', space=vmem, size = 0x1000, scoped, tag = 'scratch operand']
  #allocation3 [shape = 'f32[8,128]{1,0:T(8,128)}', space=vmem, size = 0x1000, scoped, tag = 'scratch operand']
  #allocation4 [shape = 'f32[1,1]{1,0:T(1,128)S(1)}', space=vmem, size = 0x200, scoped, tag = 'scoped memory for tpu_custom_call.1']
  %s0 = inlined_call_operand.vmem [shape: f32[8,8,4], index: 0, kind: input, shape index: {}]
  %s1 = inlined_call_operand.vmem [shape: f32[4,512], index: 1, kind: input, shape index: {}]
  %s2 = inlined_call_operand.hbm [shape: f32[128,512], index: 2, kind: input, shape index: {}]
  %s3 = inlined_call_operand.vmem [shape: f32[1,512], index: 3, kind: input, shape index: {}]
  %s4 = inlined_call_operand.vmem [shape: f32[1,128], index: 4, kind: input, shape index: {}]
  %s5 = inlined_call_operand.<no memory space> [shape: f32[1,1], index: 5, kind: input, shape index: {}]
  %s6 = inlined_call_operand.vmem [shape: f32[8,1], index: 6, kind: output, shape index: {}]
  %s7 = sld [smem:[#allocation0]]
  $region46: #{tpu_custom_call.1} parent=0
    _
  %s9 = ssub.s32 1, %s7
  %s10 = scalar_select 0, %s9, %s7
  %v11 = vstv %s5
  %12 = vst [vmem:[#allocation4] sm:$0x1] %v11
  $region1: #{tpu_custom_call.1} parent=0
    #allocation5 [shape = 'u8[262144]{0}', space=vmem, size = 0x40000, scoped, tag = 'input window, operand 2, single buffered']
    #allocation6 [shape = 's32[1]{0}', space=sflag, size = 0x4, scoped, tag = 'scoped memory for tpu_custom_call.1']
    %13 = vsyncpa [#allocation6], 0
    // Predicated region
    $region2: #{tpu_custom_call.1} parent=1 // pred_check
      _
    $region3: #{tpu_custom_call.1} parent=1 // pred_check_branch
      %15 = sbr.rel (0) target = $region5
    $region4: #{tpu_custom_call.1} parent=1 // pred_region
      _
    $region5: #{tpu_custom_call.1} parent=1 // pred_fallthru
      _
    // Predicated region
    $region6: #{tpu_custom_call.1} parent=1 // pred_check
      _
    $region7: #{tpu_custom_call.1} parent=1 // pred_check_branch
      %17 = sbr.rel (0) target = $region9
    $region8: #{tpu_custom_call.1} parent=1 // pred_region
      _
    $region9: #{tpu_custom_call.1} parent=1 // pred_fallthru
      _
    // Predicated region
    $region10: #{tpu_custom_call.1} parent=1 // pred_check
      _
    $region11: #{tpu_custom_call.1} parent=1 // pred_check_branch
      %19 = sbr.rel (0) target = $region13
    $region12: #{tpu_custom_call.1} parent=1 // pred_region
      %s21 = ssub.s32 8192, 8192
      %22 = vsyncadd [#allocation6], %s21
      %s23 = sshll.u32 [#allocation5], 4
      %s24 = int_to_ptr.vmem [resolvable:$true] %s23
      %29 = dma.hbm_to_vmem [thread:$0]  %s2, 8192, %s24, [#allocation6], 512, 512, 32
    $region13: #{tpu_custom_call.1} parent=1 // pred_fallthru
      _
    // Predicated region
    $region14: #{tpu_custom_call.1} parent=1 // pred_check
      _
    $region15: #{tpu_custom_call.1} parent=1 // pred_check_branch
      %31 = sbr.rel (0) target = $region17
    $region16: #{tpu_custom_call.1} parent=1 // pred_region
      _
    $region17: #{tpu_custom_call.1} parent=1 // pred_fallthru
      _
    // Predicated region
    $region18: #{tpu_custom_call.1} parent=1 // pred_check
      _
    $region19: #{tpu_custom_call.1} parent=1 // pred_check_branch
      %33 = sbr.rel (0) target = $region21
    $region20: #{tpu_custom_call.1} parent=1 // pred_region
      _
    $region21: #{tpu_custom_call.1} parent=1 // pred_fallthru
      _
    // Predicated region
    $region22: #{tpu_custom_call.1} parent=1 // pred_check
      _
    $region23: #{tpu_custom_call.1} parent=1 // pred_check_branch
      %35 = sbr.rel (0) target = $region25
    $region24: #{tpu_custom_call.1} parent=1 // pred_region
      _
    $region25: #{tpu_custom_call.1} parent=1 // pred_fallthru
      _
    // Predicated region
    $region26: #{tpu_custom_call.1} parent=1 // pred_check
      _
    $region27: #{tpu_custom_call.1} parent=1 // pred_check_branch
      %37 = sbr.rel (0) target = $region29
    $region28: #{tpu_custom_call.1} parent=1 // pred_region
      %38 = dma.done [#allocation6], 8192
    $region29: #{tpu_custom_call.1} parent=1 // pred_fallthru
      _
    %p39 = scmp.eq.s32.totalorder 0, 0
    // Predicated region
    $region30: #{tpu_custom_call.1} parent=1 // pred_check
      %p40 = pneg %p39
    $region31: #{tpu_custom_call.1} parent=1 // pred_check_branch
      %42 = sbr.rel (%p40) target = $region33
    $region32: #{tpu_custom_call.1} parent=1 // pred_region
      %43 = vst [vmem:[#allocation2] sm:$0xff] 0.0
      %44 = vst [vmem:[#allocation3] sm:$0xff] 0.0
    $region33: #{tpu_custom_call.1} parent=1 // pred_fallthru
      _
    %v45 = vld [vmem:[%s1] sm:$0xff]
    %v46 = vld [vmem:[%s1 + $0x8] sm:$0xff]
    %v47 = vld [vmem:[#allocation5] sm:$0xff]
    %v48 = vld [vmem:[#allocation5 + $0x8] sm:$0xff]
    %v49 = vld [vmem:[#allocation5 + $0x10] sm:$0xff]
    %v50 = vld [vmem:[#allocation5 + $0x18] sm:$0xff]
    %v51 = vld [vmem:[#allocation5 + $0x20] sm:$0xff]
    %v52 = vld [vmem:[#allocation5 + $0x28] sm:$0xff]
    %v53 = vld [vmem:[#allocation5 + $0x30] sm:$0xff]
    %v54 = vld [vmem:[#allocation5 + $0x38] sm:$0xff]
    %v55 = vld [vmem:[#allocation5 + $0x40] sm:$0xff]
    %v56 = vld [vmem:[#allocation5 + $0x48] sm:$0xff]
    %v57 = vld [vmem:[#allocation5 + $0x50] sm:$0xff]
    %v58 = vld [vmem:[#allocation5 + $0x58] sm:$0xff]
    %v59 = vld [vmem:[#allocation5 + $0x60] sm:$0xff]
    %v60 = vld [vmem:[#allocation5 + $0x68] sm:$0xff]
    %v61 = vld [vmem:[#allocation5 + $0x70] sm:$0xff]
    %v62 = vld [vmem:[#allocation5 + $0x78] sm:$0xff]
    %v63 = vld [vmem:[#allocation5 + $0x80] sm:$0xff]
    %v64 = vld [vmem:[#allocation5 + $0x88] sm:$0xff]
    %v65 = vld [vmem:[#allocation5 + $0x90] sm:$0xff]
    %v66 = vld [vmem:[#allocation5 + $0x98] sm:$0xff]
    %v67 = vld [vmem:[#allocation5 + $0xa0] sm:$0xff]
    %v68 = vld [vmem:[#allocation5 + $0xa8] sm:$0xff]
    %v69 = vld [vmem:[#allocation5 + $0xb0] sm:$0xff]
    %v70 = vld [vmem:[#allocation5 + $0xb8] sm:$0xff]
    %v71 = vld [vmem:[#allocation5 + $0xc0] sm:$0xff]
    %v72 = vld [vmem:[#allocation5 + $0xc8] sm:$0xff]
    %v73 = vld [vmem:[#allocation5 + $0xd0] sm:$0xff]
    %v74 = vld [vmem:[#allocation5 + $0xd8] sm:$0xff]
    %v75 = vld [vmem:[#allocation5 + $0xe0] sm:$0xff]
    %v76 = vld [vmem:[#allocation5 + $0xe8] sm:$0xff]
    %v77 = vld [vmem:[#allocation5 + $0xf0] sm:$0xff]
    %v78 = vld [vmem:[#allocation5 + $0xf8] sm:$0xff]
    %v79 = vld [vmem:[#allocation5 + $0x100] sm:$0xff]
    %v80 = vld [vmem:[#allocation5 + $0x108] sm:$0xff]
    %v81 = vld [vmem:[#allocation5 + $0x110] sm:$0xff]
    %v82 = vld [vmem:[#allocation5 + $0x118] sm:$0xff]
    %v83 = vld [vmem:[#allocation5 + $0x120] sm:$0xff]
    %v84 = vld [vmem:[#allocation5 + $0x128] sm:$0xff]
    %v85 = vld [vmem:[#allocation5 + $0x130] sm:$0xff]
    %v86 = vld [vmem:[#allocation5 + $0x138] sm:$0xff]
    %v87 = vld [vmem:[#allocation5 + $0x140] sm:$0xff]
    %v88 = vld [vmem:[#allocation5 + $0x148] sm:$0xff]
    %v89 = vld [vmem:[#allocation5 + $0x150] sm:$0xff]
    %v90 = vld [vmem:[#allocation5 + $0x158] sm:$0xff]
    %v91 = vld [vmem:[#allocation5 + $0x160] sm:$0xff]
    %v92 = vld [vmem:[#allocation5 + $0x168] sm:$0xff]
    %v93 = vld [vmem:[#allocation5 + $0x170] sm:$0xff]
    %v94 = vld [vmem:[#allocation5 + $0x178] sm:$0xff]
    %v95 = vld [vmem:[#allocation5 + $0x180] sm:$0xff]
    %v96 = vld [vmem:[#allocation5 + $0x188] sm:$0xff]
    %v97 = vld [vmem:[#allocation5 + $0x190] sm:$0xff]
    %v98 = vld [vmem:[#allocation5 + $0x198] sm:$0xff]
    %v99 = vld [vmem:[#allocation5 + $0x1a0] sm:$0xff]
    %v100 = vld [vmem:[#allocation5 + $0x1a8] sm:$0xff]
    %v101 = vld [vmem:[#allocation5 + $0x1b0] sm:$0xff]
    %v102 = vld [vmem:[#allocation5 + $0x1b8] sm:$0xff]
    %v103 = vld [vmem:[#allocation5 + $0x1c0] sm:$0xff]
    %v104 = vld [vmem:[#allocation5 + $0x1c8] sm:$0xff]
    %v105 = vld [vmem:[#allocation5 + $0x1d0] sm:$0xff]
    %v106 = vld [vmem:[#allocation5 + $0x1d8] sm:$0xff]
    %v107 = vld [vmem:[#allocation5 + $0x1e0] sm:$0xff]
    %v108 = vld [vmem:[#allocation5 + $0x1e8] sm:$0xff]
    %v109 = vld [vmem:[#allocation5 + $0x1f0] sm:$0xff]
    %v110 = vld [vmem:[#allocation5 + $0x1f8] sm:$0xff]
    %v111 = vld [vmem:[%s3] sm:$0xf]
    %v113 = vlaneseq
    %v114 = vshrl.u32 %v113, 7
    %v115 = vsub.s32 0, %v114
    %v116 = vrot.slane %v111, %v115
    %v117 = vlaneseq
    %v118 = vshrl.u32 %v117, 7
    %v119 = vsub.s32 1, %v118
    %v120 = vrot.slane %v111, %v119
    %v121 = vlaneseq
    %v122 = vshrl.u32 %v121, 7
    %v123 = vsub.s32 2, %v122
    %v124 = vrot.slane %v111, %v123
    %v125 = vlaneseq
    %v126 = vshrl.u32 %v125, 7
    %v127 = vsub.s32 3, %v126
    %v128 = vrot.slane %v111, %v127
    %v133 = vld [vmem:[%s0] sm:$0xff]
    %v134 = vld [vmem:[%s0 + $0x8] sm:$0xff]
    %v135 = vld [vmem:[%s0 + $0x10] sm:$0xff]
    %v136 = vld [vmem:[%s0 + $0x18] sm:$0xff]
    %v137 = vld [vmem:[%s0 + $0x20] sm:$0xff]
    %v138 = vld [vmem:[%s0 + $0x28] sm:$0xff]
    %v139 = vld [vmem:[%s0 + $0x30] sm:$0xff]
    %v140 = vld [vmem:[%s0 + $0x38] sm:$0xff]
    %v143 = vcombine.high %v45, %v45
    %v144 = vcombine.high %v46, %v46
    %vm145 = vcmask 31744
    %v147 = vsel %vm145, %v133, 0
    %v150 = vsel %vm145, %v134, 0
    %v153 = vsel %vm145, %v135, 0
    %v156 = vsel %vm145, %v136, 0
    %v159 = vsel %vm145, %v137, 0
    %v162 = vsel %vm145, %v138, 0
    %v165 = vsel %vm145, %v139, 0
    %v168 = vsel %vm145, %v140, 0
    %vm170 = vcmask 1043456
    %v171 = vsel %vm170, %v45, 0
    %v173 = vsel %vm170, %v143, 0
    %v175 = vsel %vm170, %v46, 0
    %v177 = vsel %vm170, %v144, 0
    %179 = vmatprep.subr.mxu0 %v173
    %180 = vmatpush1.msra.mxu0 %v171
    %181 = vmatprep.subr.mxu0 0.0
    %182 = vmatpush1.msra.mxu0 0.0
    %183 = vmatprep.subr.mxu0 0.0
    %184 = vmatpush1.msra.mxu0 0.0
    %185 = vmatprep.subr.mxu0 0.0
    %186 = vmatpush1.msra.mxu0 0.0
    %187 = vmatprep.subr.mxu0 0.0
    %188 = vmatpush1.msra.mxu0 0.0
    %189 = vmatprep.subr.mxu0 0.0
    %190 = vmatpush1.msra.mxu0 0.0
    %191 = vmatprep.subr.mxu0 0.0
    %192 = vmatpush1.msra.mxu0 0.0
    %193 = vmatprep.subr.mxu0 0.0
    %194 = vmatpush1.msra.mxu0 0.0
    %195 = vmatprep.subr.mxu0 0.0
    %196 = vmatpush1.msra.mxu0 0.0
    %197 = vmatprep.subr.mxu0 0.0
    %198 = vmatpush1.msra.mxu0 0.0
    %199 = vmatprep.subr.mxu0 0.0
    %200 = vmatpush1.msra.mxu0 0.0
    %201 = vmatprep.subr.mxu0 0.0
    %202 = vmatpush1.msra.mxu0 0.0
    %203 = vmatprep.subr.mxu0 0.0
    %204 = vmatpush1.msra.mxu0 0.0
    %205 = vmatprep.subr.mxu0 0.0
    %206 = vmatpush1.msra.mxu0 0.0
    %207 = vmatprep.subr.mxu0 0.0
    %208 = vmatpush1.msra.mxu0 0.0
    %209 = vmatprep.subr.mxu0 0.0
    %210 = vmatpush1.msra.mxu0 0.0
    %211 = vmatprep.subr.mxu0 0.0
    %212 = vmatpush1.msra.mxu0 0.0
    %213 = vmatprep.subr.mxu0 0.0
    %214 = vmatpush1.msra.mxu0 0.0
    %215 = vmatprep.subr.mxu0 0.0
    %216 = vmatpush1.msra.mxu0 0.0
    %217 = vmatprep.subr.mxu0 0.0
    %218 = vmatpush1.msra.mxu0 0.0
    %219 = vmatprep.subr.mxu0 0.0
    %220 = vmatpush1.msra.mxu0 0.0
    %221 = vmatprep.subr.mxu0 0.0
    %222 = vmatpush1.msra.mxu0 0.0
    %223 = vmatprep.subr.mxu0 0.0
    %224 = vmatpush1.msra.mxu0 0.0
    %225 = vmatprep.subr.mxu0 0.0
    %226 = vmatpush1.msra.mxu0 0.0
    %227 = vmatprep.subr.mxu0 0.0
    %228 = vmatpush1.msra.mxu0 0.0
    %229 = vmatprep.subr.mxu0 0.0
    %230 = vmatpush1.msra.mxu0 0.0
    %231 = vmatprep.subr.mxu0 0.0
    %232 = vmatpush1.msra.mxu0 0.0
    %233 = vmatprep.subr.mxu0 0.0
    %234 = vmatpush1.msra.mxu0 0.0
    %235 = vmatprep.subr.mxu0 0.0
    %236 = vmatpush1.msra.mxu0 0.0
    %237 = vmatprep.subr.mxu0 0.0
    %238 = vmatpush1.msra.mxu0 0.0
    %239 = vmatprep.subr.mxu0 0.0
    %240 = vmatpush1.msra.mxu0 0.0
    %241 = vmatprep.subr.mxu0 0.0
    %242 = vmatpush1.msra.mxu0 0.0
    %243 = vmatprep.mubr.f32.mxu0 0.0
    %244 = vmatmul.mubr.f32.gmra.mrb[0].mxu0 %v147
    %v245 = vpop.f32.mrb[0].mxu0
    %v246 = vadd.f32 0.0, %v245
    %v247 = vpop.f32.mrb[0].mxu0
    %v248 = vadd.f32 0.0, %v247
    %249 = vmatprep.mubr.f32.mxu0 0.0
    %250 = vmatmul.mubr.f32.gmra.mrb[0].mxu0 %v150
    %v251 = vpop.f32.mrb[0].mxu0
    %v252 = vadd.f32 0.0, %v251
    %v253 = vpop.f32.mrb[0].mxu0
    %v254 = vadd.f32 0.0, %v253
    %255 = vmatprep.mubr.f32.mxu0 0.0
    %256 = vmatmul.mubr.f32.gmra.mrb[0].mxu0 %v153
    %v257 = vpop.f32.mrb[0].mxu0
    %v258 = vadd.f32 0.0, %v257
    %v259 = vpop.f32.mrb[0].mxu0
    %v260 = vadd.f32 0.0, %v259
    %261 = vmatprep.mubr.f32.mxu0 0.0
    %262 = vmatmul.mubr.f32.gmra.mrb[0].mxu0 %v156
    %v263 = vpop.f32.mrb[0].mxu0
    %v264 = vadd.f32 0.0, %v263
    %v265 = vpop.f32.mrb[0].mxu0
    %v266 = vadd.f32 0.0, %v265
    %267 = vmatprep.mubr.f32.mxu0 0.0
    %268 = vmatmul.mubr.f32.gmra.mrb[0].mxu0 %v159
    %v269 = vpop.f32.mrb[0].mxu0
    %v270 = vadd.f32 0.0, %v269
    %v271 = vpop.f32.mrb[0].mxu0
    %v272 = vadd.f32 0.0, %v271
    %273 = vmatprep.mubr.f32.mxu0 0.0
    %274 = vmatmul.mubr.f32.gmra.mrb[0].mxu0 %v162
    %v275 = vpop.f32.mrb[0].mxu0
    %v276 = vadd.f32 0.0, %v275
    %v277 = vpop.f32.mrb[0].mxu0
    %v278 = vadd.f32 0.0, %v277
    %279 = vmatprep.mubr.f32.mxu0 0.0
    %280 = vmatmul.mubr.f32.gmra.mrb[0].mxu0 %v165
    %v281 = vpop.f32.mrb[0].mxu0
    %v282 = vadd.f32 0.0, %v281
    %v283 = vpop.f32.mrb[0].mxu0
    %v284 = vadd.f32 0.0, %v283
    %285 = vmatprep.mubr.f32.mxu0 0.0
    %286 = vmatmul.mubr.f32.gmra.mrb[0].mxu0 %v168
    %v287 = vpop.f32.mrb[0].mxu0
    %v288 = vadd.f32 0.0, %v287
    %v289 = vpop.f32.mrb[0].mxu0
    %v290 = vadd.f32 0.0, %v289
    %291 = vdwg.mxu0
    %292 = vmatprep.subr.mxu0 %v177
    %293 = vmatpush1.msra.mxu0 %v175
    %294 = vmatprep.subr.mxu0 0.0
    %295 = vmatpush1.msra.mxu0 0.0
    %296 = vmatprep.subr.mxu0 0.0
    %297 = vmatpush1.msra.mxu0 0.0
    %298 = vmatprep.subr.mxu0 0.0
    %299 = vmatpush1.msra.mxu0 0.0
    %300 = vmatprep.subr.mxu0 0.0
    %301 = vmatpush1.msra.mxu0 0.0
    %302 = vmatprep.subr.mxu0 0.0
    %303 = vmatpush1.msra.mxu0 0.0
    %304 = vmatprep.subr.mxu0 0.0
    %305 = vmatpush1.msra.mxu0 0.0
    %306 = vmatprep.subr.mxu0 0.0
    %307 = vmatpush1.msra.mxu0 0.0
    %308 = vmatprep.subr.mxu0 0.0
    %309 = vmatpush1.msra.mxu0 0.0
    %310 = vmatprep.subr.mxu0 0.0
    %311 = vmatpush1.msra.mxu0 0.0
    %312 = vmatprep.subr.mxu0 0.0
    %313 = vmatpush1.msra.mxu0 0.0
    %314 = vmatprep.subr.mxu0 0.0
    %315 = vmatpush1.msra.mxu0 0.0
    %316 = vmatprep.subr.mxu0 0.0
    %317 = vmatpush1.msra.mxu0 0.0
    %318 = vmatprep.subr.mxu0 0.0
    %319 = vmatpush1.msra.mxu0 0.0
    %320 = vmatprep.subr.mxu0 0.0
    %321 = vmatpush1.msra.mxu0 0.0
    %322 = vmatprep.subr.mxu0 0.0
    %323 = vmatpush1.msra.mxu0 0.0
    %324 = vmatprep.subr.mxu0 0.0
    %325 = vmatpush1.msra.mxu0 0.0
    %326 = vmatprep.subr.mxu0 0.0
    %327 = vmatpush1.msra.mxu0 0.0
    %328 = vmatprep.subr.mxu0 0.0
    %329 = vmatpush1.msra.mxu0 0.0
    %330 = vmatprep.subr.mxu0 0.0
    %331 = vmatpush1.msra.mxu0 0.0
    %332 = vmatprep.subr.mxu0 0.0
    %333 = vmatpush1.msra.mxu0 0.0
    %334 = vmatprep.subr.mxu0 0.0
    %335 = vmatpush1.msra.mxu0 0.0
    %336 = vmatprep.subr.mxu0 0.0
    %337 = vmatpush1.msra.mxu0 0.0
    %338 = vmatprep.subr.mxu0 0.0
    %339 = vmatpush1.msra.mxu0 0.0
    %340 = vmatprep.subr.mxu0 0.0
    %341 = vmatpush1.msra.mxu0 0.0
    %342 = vmatprep.subr.mxu0 0.0
    %343 = vmatpush1.msra.mxu0 0.0
    %344 = vmatprep.subr.mxu0 0.0
    %345 = vmatpush1.msra.mxu0 0.0
    %346 = vmatprep.subr.mxu0 0.0
    %347 = vmatpush1.msra.mxu0 0.0
    %348 = vmatprep.subr.mxu0 0.0
    %349 = vmatpush1.msra.mxu0 0.0
    %350 = vmatprep.subr.mxu0 0.0
    %351 = vmatpush1.msra.mxu0 0.0
    %352 = vmatprep.subr.mxu0 0.0
    %353 = vmatpush1.msra.mxu0 0.0
    %354 = vmatprep.subr.mxu0 0.0
    %355 = vmatpush1.msra.mxu0 0.0
    %356 = vmatprep.mubr.f32.mxu0 0.0
    %357 = vmatmul.mubr.f32.gmra.mrb[0].mxu0 %v147
    %v358 = vpop.f32.mrb[0].mxu0
    %v359 = vadd.f32 0.0, %v358
    %v360 = vpop.f32.mrb[0].mxu0
    %v361 = vadd.f32 0.0, %v360
    %362 = vmatprep.mubr.f32.mxu0 0.0
    %363 = vmatmul.mubr.f32.gmra.mrb[0].mxu0 %v150
    %v364 = vpop.f32.mrb[0].mxu0
    %v365 = vadd.f32 0.0, %v364
    %v366 = vpop.f32.mrb[0].mxu0
    %v367 = vadd.f32 0.0, %v366
    %368 = vmatprep.mubr.f32.mxu0 0.0
    %369 = vmatmul.mubr.f32.gmra.mrb[0].mxu0 %v153
    %v370 = vpop.f32.mrb[0].mxu0
    %v371 = vadd.f32 0.0, %v370
    %v372 = vpop.f32.mrb[0].mxu0
    %v373 = vadd.f32 0.0, %v372
    %374 = vmatprep.mubr.f32.mxu0 0.0
    %375 = vmatmul.mubr.f32.gmra.mrb[0].mxu0 %v156
    %v376 = vpop.f32.mrb[0].mxu0
    %v377 = vadd.f32 0.0, %v376
    %v378 = vpop.f32.mrb[0].mxu0
    %v379 = vadd.f32 0.0, %v378
    %380 = vmatprep.mubr.f32.mxu0 0.0
    %381 = vmatmul.mubr.f32.gmra.mrb[0].mxu0 %v159
    %v382 = vpop.f32.mrb[0].mxu0
    %v383 = vadd.f32 0.0, %v382
    %v384 = vpop.f32.mrb[0].mxu0
    %v385 = vadd.f32 0.0, %v384
    %386 = vmatprep.mubr.f32.mxu0 0.0
    %387 = vmatmul.mubr.f32.gmra.mrb[0].mxu0 %v162
    %v388 = vpop.f32.mrb[0].mxu0
    %v389 = vadd.f32 0.0, %v388
    %v390 = vpop.f32.mrb[0].mxu0
    %v391 = vadd.f32 0.0, %v390
    %392 = vmatprep.mubr.f32.mxu0 0.0
    %393 = vmatmul.mubr.f32.gmra.mrb[0].mxu0 %v165
    %v394 = vpop.f32.mrb[0].mxu0
    %v395 = vadd.f32 0.0, %v394
    %v396 = vpop.f32.mrb[0].mxu0
    %v397 = vadd.f32 0.0, %v396
    %398 = vmatprep.mubr.f32.mxu0 0.0
    %399 = vmatmul.mubr.f32.gmra.mrb[0].mxu0 %v168
    %v400 = vpop.f32.mrb[0].mxu0
    %v401 = vadd.f32 0.0, %v400
    %v402 = vpop.f32.mrb[0].mxu0
    %v403 = vadd.f32 0.0, %v402
    %404 = vdwg.mxu0
    %v405 = vld [vmem:[#allocation2] sm:$0xff]
    %v406 = vld [vmem:[#allocation3] sm:$0xff]
    %407 = vmatprep.subr.mxu0 %v48
    %408 = vmatpush1.msra.mxu0 %v47
    %409 = vmatprep.subr.mxu0 %v52
    %410 = vmatpush1.msra.mxu0 %v51
    %411 = vmatprep.subr.mxu0 %v56
    %412 = vmatpush1.msra.mxu0 %v55
    %413 = vmatprep.subr.mxu0 %v60
    %414 = vmatpush1.msra.mxu0 %v59
    %415 = vmatprep.subr.mxu0 %v64
    %416 = vmatpush1.msra.mxu0 %v63
    %417 = vmatprep.subr.mxu0 %v68
    %418 = vmatpush1.msra.mxu0 %v67
    %419 = vmatprep.subr.mxu0 %v72
    %420 = vmatpush1.msra.mxu0 %v71
    %421 = vmatprep.subr.mxu0 %v76
    %422 = vmatpush1.msra.mxu0 %v75
    %423 = vmatprep.subr.mxu0 %v80
    %424 = vmatpush1.msra.mxu0 %v79
    %425 = vmatprep.subr.mxu0 %v84
    %426 = vmatpush1.msra.mxu0 %v83
    %427 = vmatprep.subr.mxu0 %v88
    %428 = vmatpush1.msra.mxu0 %v87
    %429 = vmatprep.subr.mxu0 %v92
    %430 = vmatpush1.msra.mxu0 %v91
    %431 = vmatprep.subr.mxu0 %v96
    %432 = vmatpush1.msra.mxu0 %v95
    %433 = vmatprep.subr.mxu0 %v100
    %434 = vmatpush1.msra.mxu0 %v99
    %435 = vmatprep.subr.mxu0 %v104
    %436 = vmatpush1.msra.mxu0 %v103
    %437 = vmatprep.subr.mxu0 %v108
    %438 = vmatpush1.msra.mxu0 %v107
    %439 = vmatprep.subr.mxu0 0.0
    %440 = vmatpush1.msra.mxu0 0.0
    %441 = vmatprep.subr.mxu0 0.0
    %442 = vmatpush1.msra.mxu0 0.0
    %443 = vmatprep.subr.mxu0 0.0
    %444 = vmatpush1.msra.mxu0 0.0
    %445 = vmatprep.subr.mxu0 0.0
    %446 = vmatpush1.msra.mxu0 0.0
    %447 = vmatprep.subr.mxu0 0.0
    %448 = vmatpush1.msra.mxu0 0.0
    %449 = vmatprep.subr.mxu0 0.0
    %450 = vmatpush1.msra.mxu0 0.0
    %451 = vmatprep.subr.mxu0 0.0
    %452 = vmatpush1.msra.mxu0 0.0
    %453 = vmatprep.subr.mxu0 0.0
    %454 = vmatpush1.msra.mxu0 0.0
    %455 = vmatprep.subr.mxu0 0.0
    %456 = vmatpush1.msra.mxu0 0.0
    %457 = vmatprep.subr.mxu0 0.0
    %458 = vmatpush1.msra.mxu0 0.0
    %459 = vmatprep.subr.mxu0 0.0
    %460 = vmatpush1.msra.mxu0 0.0
    %461 = vmatprep.subr.mxu0 0.0
    %462 = vmatpush1.msra.mxu0 0.0
    %463 = vmatprep.subr.mxu0 0.0
    %464 = vmatpush1.msra.mxu0 0.0
    %465 = vmatprep.subr.mxu0 0.0
    %466 = vmatpush1.msra.mxu0 0.0
    %467 = vmatprep.subr.mxu0 0.0
    %468 = vmatpush1.msra.mxu0 0.0
    %469 = vmatprep.subr.mxu0 0.0
    %470 = vmatpush1.msra.mxu0 0.0
    %471 = vmatprep.mubr.f32.mxu0 0.0
    %472 = vmatmul.mubr.f32.gmra.mrb[0].mxu0 %v405
    %v473 = vpop.f32.mrb[0].mxu0
    %v474 = vadd.f32 0.0, %v473
    %v475 = vpop.f32.mrb[0].mxu0
    %v476 = vadd.f32 0.0, %v475
    %477 = vdwg.mxu0
    %478 = vmatprep.subr.mxu0 %v50
    %479 = vmatpush1.msra.mxu0 %v49
    %480 = vmatprep.subr.mxu0 %v54
    %481 = vmatpush1.msra.mxu0 %v53
    %482 = vmatprep.subr.mxu0 %v58
    %483 = vmatpush1.msra.mxu0 %v57
    %484 = vmatprep.subr.mxu0 %v62
    %485 = vmatpush1.msra.mxu0 %v61
    %486 = vmatprep.subr.mxu0 %v66
    %487 = vmatpush1.msra.mxu0 %v65
    %488 = vmatprep.subr.mxu0 %v70
    %489 = vmatpush1.msra.mxu0 %v69
    %490 = vmatprep.subr.mxu0 %v74
    %491 = vmatpush1.msra.mxu0 %v73
    %492 = vmatprep.subr.mxu0 %v78
    %493 = vmatpush1.msra.mxu0 %v77
    %494 = vmatprep.subr.mxu0 %v82
    %495 = vmatpush1.msra.mxu0 %v81
    %496 = vmatprep.subr.mxu0 %v86
    %497 = vmatpush1.msra.mxu0 %v85
    %498 = vmatprep.subr.mxu0 %v90
    %499 = vmatpush1.msra.mxu0 %v89
    %500 = vmatprep.subr.mxu0 %v94
    %501 = vmatpush1.msra.mxu0 %v93
    %502 = vmatprep.subr.mxu0 %v98
    %503 = vmatpush1.msra.mxu0 %v97
    %504 = vmatprep.subr.mxu0 %v102
    %505 = vmatpush1.msra.mxu0 %v101
    %506 = vmatprep.subr.mxu0 %v106
    %507 = vmatpush1.msra.mxu0 %v105
    %508 = vmatprep.subr.mxu0 %v110
    %509 = vmatpush1.msra.mxu0 %v109
    %510 = vmatprep.subr.mxu0 0.0
    %511 = vmatpush1.msra.mxu0 0.0
    %512 = vmatprep.subr.mxu0 0.0
    %513 = vmatpush1.msra.mxu0 0.0
    %514 = vmatprep.subr.mxu0 0.0
    %515 = vmatpush1.msra.mxu0 0.0
    %516 = vmatprep.subr.mxu0 0.0
    %517 = vmatpush1.msra.mxu0 0.0
    %518 = vmatprep.subr.mxu0 0.0
    %519 = vmatpush1.msra.mxu0 0.0
    %520 = vmatprep.subr.mxu0 0.0
    %521 = vmatpush1.msra.mxu0 0.0
    %522 = vmatprep.subr.mxu0 0.0
    %523 = vmatpush1.msra.mxu0 0.0
    %524 = vmatprep.subr.mxu0 0.0
    %525 = vmatpush1.msra.mxu0 0.0
    %526 = vmatprep.subr.mxu0 0.0
    %527 = vmatpush1.msra.mxu0 0.0
    %528 = vmatprep.subr.mxu0 0.0
    %529 = vmatpush1.msra.mxu0 0.0
    %530 = vmatprep.subr.mxu0 0.0
    %531 = vmatpush1.msra.mxu0 0.0
    %532 = vmatprep.subr.mxu0 0.0
    %533 = vmatpush1.msra.mxu0 0.0
    %534 = vmatprep.subr.mxu0 0.0
    %535 = vmatpush1.msra.mxu0 0.0
    %536 = vmatprep.subr.mxu0 0.0
    %537 = vmatpush1.msra.mxu0 0.0
    %538 = vmatprep.subr.mxu0 0.0
    %539 = vmatpush1.msra.mxu0 0.0
    %540 = vmatprep.subr.mxu0 0.0
    %541 = vmatpush1.msra.mxu0 0.0
    %542 = vmatprep.mubr.f32.mxu0 0.0
    %543 = vmatmul.mubr.f32.gmra.mrb[0].mxu0 %v405
    %v544 = vpop.f32.mrb[0].mxu0
    %v545 = vadd.f32 0.0, %v544
    %v546 = vpop.f32.mrb[0].mxu0
    %v547 = vadd.f32 0.0, %v546
    %548 = vdwg.mxu0
    %v549 = vadd.f32 %v246, %v474
    %v550 = vadd.f32 %v248, %v476
    %v551 = vadd.f32 %v359, %v545
    %v552 = vadd.f32 %v361, %v547
    %v553 = vadd.f32 %v549, %v116
    %v554 = vadd.f32 %v550, %v120
    %v555 = vadd.f32 %v551, %v124
    %v556 = vadd.f32 %v552, %v128
    %v557 = vxor.u32 %v553, 2147483648
    %v558 = vmul.f32 %v557, 1.442695
    %v559 = vpow.pop %v558
    %v560 = vadd.f32 %v559, 1.0
    %v561 = vrcp.pop %v560
    %v562 = vmul.f32 1.0, %v561
    %v563 = vxor.u32 %v554, 2147483648
    %v564 = vmul.f32 %v563, 1.442695
    %v565 = vpow.pop %v564
    %v566 = vadd.f32 %v565, 1.0
    %v567 = vrcp.pop %v566
    %v568 = vmul.f32 1.0, %v567
    %v569 = vtanh.pop %v555
    %v570 = vxor.u32 %v556, 2147483648
    %v571 = vmul.f32 %v570, 1.442695
    %v572 = vpow.pop %v571
    %v573 = vadd.f32 %v572, 1.0
    %v574 = vrcp.pop %v573
    %v575 = vmul.f32 1.0, %v574
    %v576 = vmul.f32 %v568, %v406
    %v577 = vmul.f32 %v562, %v569
    %v578 = vadd.f32 %v576, %v577
    %v579 = vtanh.pop %v578
    %v580 = vmul.f32 %v575, %v579
    %581 = vmatprep.subr.mxu0 %v48
    %582 = vmatpush1.msra.mxu0 %v47
    %583 = vmatprep.subr.mxu0 %v52
    %584 = vmatpush1.msra.mxu0 %v51
    %585 = vmatprep.subr.mxu0 %v56
    %586 = vmatpush1.msra.mxu0 %v55
    %587 = vmatprep.subr.mxu0 %v60
    %588 = vmatpush1.msra.mxu0 %v59
    %589 = vmatprep.subr.mxu0 %v64
    %590 = vmatpush1.msra.mxu0 %v63
    %591 = vmatprep.subr.mxu0 %v68
    %592 = vmatpush1.msra.mxu0 %v67
    %593 = vmatprep.subr.mxu0 %v72
    %594 = vmatpush1.msra.mxu0 %v71
    %595 = vmatprep.subr.mxu0 %v76
    %596 = vmatpush1.msra.mxu0 %v75
    %597 = vmatprep.subr.mxu0 %v80
    %598 = vmatpush1.msra.mxu0 %v79
    %599 = vmatprep.subr.mxu0 %v84
    %600 = vmatpush1.msra.mxu0 %v83
    %601 = vmatprep.subr.mxu0 %v88
    %602 = vmatpush1.msra.mxu0 %v87
    %603 = vmatprep.subr.mxu0 %v92
    %604 = vmatpush1.msra.mxu0 %v91
    %605 = vmatprep.subr.mxu0 %v96
    %606 = vmatpush1.msra.mxu0 %v95
    %607 = vmatprep.subr.mxu0 %v100
    %608 = vmatpush1.msra.mxu0 %v99
    %609 = vmatprep.subr.mxu0 %v104
    %610 = vmatpush1.msra.mxu0 %v103
    %611 = vmatprep.subr.mxu0 %v108
    %612 = vmatpush1.msra.mxu0 %v107
    %613 = vmatprep.subr.mxu0 0.0
    %614 = vmatpush1.msra.mxu0 0.0
    %615 = vmatprep.subr.mxu0 0.0
    %616 = vmatpush1.msra.mxu0 0.0
    %617 = vmatprep.subr.mxu0 0.0
    %618 = vmatpush1.msra.mxu0 0.0
    %619 = vmatprep.subr.mxu0 0.0
    %620 = vmatpush1.msra.mxu0 0.0
    %621 = vmatprep.subr.mxu0 0.0
    %622 = vmatpush1.msra.mxu0 0.0
    %623 = vmatprep.subr.mxu0 0.0
    %624 = vmatpush1.msra.mxu0 0.0
    %625 = vmatprep.subr.mxu0 0.0
    %626 = vmatpush1.msra.mxu0 0.0
    %627 = vmatprep.subr.mxu0 0.0
    %628 = vmatpush1.msra.mxu0 0.0
    %629 = vmatprep.subr.mxu0 0.0
    %630 = vmatpush1.msra.mxu0 0.0
    %631 = vmatprep.subr.mxu0 0.0
    %632 = vmatpush1.msra.mxu0 0.0
    %633 = vmatprep.subr.mxu0 0.0
    %634 = vmatpush1.msra.mxu0 0.0
    %635 = vmatprep.subr.mxu0 0.0
    %636 = vmatpush1.msra.mxu0 0.0
    %637 = vmatprep.subr.mxu0 0.0
    %638 = vmatpush1.msra.mxu0 0.0
    %639 = vmatprep.subr.mxu0 0.0
    %640 = vmatpush1.msra.mxu0 0.0
    %641 = vmatprep.subr.mxu0 0.0
    %642 = vmatpush1.msra.mxu0 0.0
    %643 = vmatprep.subr.mxu0 0.0
    %644 = vmatpush1.msra.mxu0 0.0
    %645 = vmatprep.mubr.f32.mxu0 0.0
    %646 = vmatmul.mubr.f32.gmra.mrb[0].mxu0 %v580
    %v647 = vpop.f32.mrb[0].mxu0
    %v648 = vadd.f32 0.0, %v647
    %v649 = vpop.f32.mrb[0].mxu0
    %v650 = vadd.f32 0.0, %v649
    %651 = vdwg.mxu0
    %652 = vmatprep.subr.mxu0 %v50
    %653 = vmatpush1.msra.mxu0 %v49
    %654 = vmatprep.subr.mxu0 %v54
    %655 = vmatpush1.msra.mxu0 %v53
    %656 = vmatprep.subr.mxu0 %v58
    %657 = vmatpush1.msra.mxu0 %v57
    %658 = vmatprep.subr.mxu0 %v62
    %659 = vmatpush1.msra.mxu0 %v61
    %660 = vmatprep.subr.mxu0 %v66
    %661 = vmatpush1.msra.mxu0 %v65
    %662 = vmatprep.subr.mxu0 %v70
    %663 = vmatpush1.msra.mxu0 %v69
    %664 = vmatprep.subr.mxu0 %v74
    %665 = vmatpush1.msra.mxu0 %v73
    %666 = vmatprep.subr.mxu0 %v78
    %667 = vmatpush1.msra.mxu0 %v77
    %668 = vmatprep.subr.mxu0 %v82
    %669 = vmatpush1.msra.mxu0 %v81
    %670 = vmatprep.subr.mxu0 %v86
    %671 = vmatpush1.msra.mxu0 %v85
    %672 = vmatprep.subr.mxu0 %v90
    %673 = vmatpush1.msra.mxu0 %v89
    %674 = vmatprep.subr.mxu0 %v94
    %675 = vmatpush1.msra.mxu0 %v93
    %676 = vmatprep.subr.mxu0 %v98
    %677 = vmatpush1.msra.mxu0 %v97
    %678 = vmatprep.subr.mxu0 %v102
    %679 = vmatpush1.msra.mxu0 %v101
    %680 = vmatprep.subr.mxu0 %v106
    %681 = vmatpush1.msra.mxu0 %v105
    %682 = vmatprep.subr.mxu0 %v110
    %683 = vmatpush1.msra.mxu0 %v109
    %684 = vmatprep.subr.mxu0 0.0
    %685 = vmatpush1.msra.mxu0 0.0
    %686 = vmatprep.subr.mxu0 0.0
    %687 = vmatpush1.msra.mxu0 0.0
    %688 = vmatprep.subr.mxu0 0.0
    %689 = vmatpush1.msra.mxu0 0.0
    %690 = vmatprep.subr.mxu0 0.0
    %691 = vmatpush1.msra.mxu0 0.0
    %692 = vmatprep.subr.mxu0 0.0
    %693 = vmatpush1.msra.mxu0 0.0
    %694 = vmatprep.subr.mxu0 0.0
    %695 = vmatpush1.msra.mxu0 0.0
    %696 = vmatprep.subr.mxu0 0.0
    %697 = vmatpush1.msra.mxu0 0.0
    %698 = vmatprep.subr.mxu0 0.0
    %699 = vmatpush1.msra.mxu0 0.0
    %700 = vmatprep.subr.mxu0 0.0
    %701 = vmatpush1.msra.mxu0 0.0
    %702 = vmatprep.subr.mxu0 0.0
    %703 = vmatpush1.msra.mxu0 0.0
    %704 = vmatprep.subr.mxu0 0.0
    %705 = vmatpush1.msra.mxu0 0.0
    %706 = vmatprep.subr.mxu0 0.0
    %707 = vmatpush1.msra.mxu0 0.0
    %708 = vmatprep.subr.mxu0 0.0
    %709 = vmatpush1.msra.mxu0 0.0
    %710 = vmatprep.subr.mxu0 0.0
    %711 = vmatpush1.msra.mxu0 0.0
    %712 = vmatprep.subr.mxu0 0.0
    %713 = vmatpush1.msra.mxu0 0.0
    %714 = vmatprep.subr.mxu0 0.0
    %715 = vmatpush1.msra.mxu0 0.0
    %716 = vmatprep.mubr.f32.mxu0 0.0
    %717 = vmatmul.mubr.f32.gmra.mrb[0].mxu0 %v580
    %v718 = vpop.f32.mrb[0].mxu0
    %v719 = vadd.f32 0.0, %v718
    %v720 = vpop.f32.mrb[0].mxu0
    %v721 = vadd.f32 0.0, %v720
    %722 = vdwg.mxu0
    %v723 = vadd.f32 %v252, %v648
    %v724 = vadd.f32 %v254, %v650
    %v725 = vadd.f32 %v365, %v719
    %v726 = vadd.f32 %v367, %v721
    %v727 = vadd.f32 %v723, %v116
    %v728 = vadd.f32 %v724, %v120
    %v729 = vadd.f32 %v725, %v124
    %v730 = vadd.f32 %v726, %v128
    %v731 = vxor.u32 %v727, 2147483648
    %v732 = vmul.f32 %v731, 1.442695
    %v733 = vpow.pop %v732
    %v734 = vadd.f32 %v733, 1.0
    %v735 = vrcp.pop %v734
    %v736 = vmul.f32 1.0, %v735
    %v737 = vxor.u32 %v728, 2147483648
    %v738 = vmul.f32 %v737, 1.442695
    %v739 = vpow.pop %v738
    %v740 = vadd.f32 %v739, 1.0
    %v741 = vrcp.pop %v740
    %v742 = vmul.f32 1.0, %v741
    %v743 = vtanh.pop %v729
    %v744 = vxor.u32 %v730, 2147483648
    %v745 = vmul.f32 %v744, 1.442695
    %v746 = vpow.pop %v745
    %v747 = vadd.f32 %v746, 1.0
    %v748 = vrcp.pop %v747
    %v749 = vmul.f32 1.0, %v748
    %v750 = vmul.f32 %v742, %v578
    %v751 = vmul.f32 %v736, %v743
    %v752 = vadd.f32 %v750, %v751
    %v753 = vtanh.pop %v752
    %v754 = vmul.f32 %v749, %v753
    %755 = vmatprep.subr.mxu0 %v48
    %756 = vmatpush1.msra.mxu0 %v47
    %757 = vmatprep.subr.mxu0 %v52
    %758 = vmatpush1.msra.mxu0 %v51
    %759 = vmatprep.subr.mxu0 %v56
    %760 = vmatpush1.msra.mxu0 %v55
    %761 = vmatprep.subr.mxu0 %v60
    %762 = vmatpush1.msra.mxu0 %v59
    %763 = vmatprep.subr.mxu0 %v64
    %764 = vmatpush1.msra.mxu0 %v63
    %765 = vmatprep.subr.mxu0 %v68
    %766 = vmatpush1.msra.mxu0 %v67
    %767 = vmatprep.subr.mxu0 %v72
    %768 = vmatpush1.msra.mxu0 %v71
    %769 = vmatprep.subr.mxu0 %v76
    %770 = vmatpush1.msra.mxu0 %v75
    %771 = vmatprep.subr.mxu0 %v80
    %772 = vmatpush1.msra.mxu0 %v79
    %773 = vmatprep.subr.mxu0 %v84
    %774 = vmatpush1.msra.mxu0 %v83
    %775 = vmatprep.subr.mxu0 %v88
    %776 = vmatpush1.msra.mxu0 %v87
    %777 = vmatprep.subr.mxu0 %v92
    %778 = vmatpush1.msra.mxu0 %v91
    %779 = vmatprep.subr.mxu0 %v96
    %780 = vmatpush1.msra.mxu0 %v95
    %781 = vmatprep.subr.mxu0 %v100
    %782 = vmatpush1.msra.mxu0 %v99
    %783 = vmatprep.subr.mxu0 %v104
    %784 = vmatpush1.msra.mxu0 %v103
    %785 = vmatprep.subr.mxu0 %v108
    %786 = vmatpush1.msra.mxu0 %v107
    %787 = vmatprep.subr.mxu0 0.0
    %788 = vmatpush1.msra.mxu0 0.0
    %789 = vmatprep.subr.mxu0 0.0
    %790 = vmatpush1.msra.mxu0 0.0
    %791 = vmatprep.subr.mxu0 0.0
    %792 = vmatpush1.msra.mxu0 0.0
    %793 = vmatprep.subr.mxu0 0.0
    %794 = vmatpush1.msra.mxu0 0.0
    %795 = vmatprep.subr.mxu0 0.0
    %796 = vmatpush1.msra.mxu0 0.0
    %797 = vmatprep.subr.mxu0 0.0
    %798 = vmatpush1.msra.mxu0 0.0
    %799 = vmatprep.subr.mxu0 0.0
    %800 = vmatpush1.msra.mxu0 0.0
    %801 = vmatprep.subr.mxu0 0.0
    %802 = vmatpush1.msra.mxu0 0.0
    %803 = vmatprep.subr.mxu0 0.0
    %804 = vmatpush1.msra.mxu0 0.0
    %805 = vmatprep.subr.mxu0 0.0
    %806 = vmatpush1.msra.mxu0 0.0
    %807 = vmatprep.subr.mxu0 0.0
    %808 = vmatpush1.msra.mxu0 0.0
    %809 = vmatprep.subr.mxu0 0.0
    %810 = vmatpush1.msra.mxu0 0.0
    %811 = vmatprep.subr.mxu0 0.0
    %812 = vmatpush1.msra.mxu0 0.0
    %813 = vmatprep.subr.mxu0 0.0
    %814 = vmatpush1.msra.mxu0 0.0
    %815 = vmatprep.subr.mxu0 0.0
    %816 = vmatpush1.msra.mxu0 0.0
    %817 = vmatprep.subr.mxu0 0.0
    %818 = vmatpush1.msra.mxu0 0.0
    %819 = vmatprep.mubr.f32.mxu0 0.0
    %820 = vmatmul.mubr.f32.gmra.mrb[0].mxu0 %v754
    %v821 = vpop.f32.mrb[0].mxu0
    %v822 = vadd.f32 0.0, %v821
    %v823 = vpop.f32.mrb[0].mxu0
    %v824 = vadd.f32 0.0, %v823
    %825 = vdwg.mxu0
    %826 = vmatprep.subr.mxu0 %v50
    %827 = vmatpush1.msra.mxu0 %v49
    %828 = vmatprep.subr.mxu0 %v54
    %829 = vmatpush1.msra.mxu0 %v53
    %830 = vmatprep.subr.mxu0 %v58
    %831 = vmatpush1.msra.mxu0 %v57
    %832 = vmatprep.subr.mxu0 %v62
    %833 = vmatpush1.msra.mxu0 %v61
    %834 = vmatprep.subr.mxu0 %v66
    %835 = vmatpush1.msra.mxu0 %v65
    %836 = vmatprep.subr.mxu0 %v70
    %837 = vmatpush1.msra.mxu0 %v69
    %838 = vmatprep.subr.mxu0 %v74
    %839 = vmatpush1.msra.mxu0 %v73
    %840 = vmatprep.subr.mxu0 %v78
    %841 = vmatpush1.msra.mxu0 %v77
    %842 = vmatprep.subr.mxu0 %v82
    %843 = vmatpush1.msra.mxu0 %v81
    %844 = vmatprep.subr.mxu0 %v86
    %845 = vmatpush1.msra.mxu0 %v85
    %846 = vmatprep.subr.mxu0 %v90
    %847 = vmatpush1.msra.mxu0 %v89
    %848 = vmatprep.subr.mxu0 %v94
    %849 = vmatpush1.msra.mxu0 %v93
    %850 = vmatprep.subr.mxu0 %v98
    %851 = vmatpush1.msra.mxu0 %v97
    %852 = vmatprep.subr.mxu0 %v102
    %853 = vmatpush1.msra.mxu0 %v101
    %854 = vmatprep.subr.mxu0 %v106
    %855 = vmatpush1.msra.mxu0 %v105
    %856 = vmatprep.subr.mxu0 %v110
    %857 = vmatpush1.msra.mxu0 %v109
    %858 = vmatprep.subr.mxu0 0.0
    %859 = vmatpush1.msra.mxu0 0.0
    %860 = vmatprep.subr.mxu0 0.0
    %861 = vmatpush1.msra.mxu0 0.0
    %862 = vmatprep.subr.mxu0 0.0
    %863 = vmatpush1.msra.mxu0 0.0
    %864 = vmatprep.subr.mxu0 0.0
    %865 = vmatpush1.msra.mxu0 0.0
    %866 = vmatprep.subr.mxu0 0.0
    %867 = vmatpush1.msra.mxu0 0.0
    %868 = vmatprep.subr.mxu0 0.0
    %869 = vmatpush1.msra.mxu0 0.0
    %870 = vmatprep.subr.mxu0 0.0
    %871 = vmatpush1.msra.mxu0 0.0
    %872 = vmatprep.subr.mxu0 0.0
    %873 = vmatpush1.msra.mxu0 0.0
    %874 = vmatprep.subr.mxu0 0.0
    %875 = vmatpush1.msra.mxu0 0.0
    %876 = vmatprep.subr.mxu0 0.0
    %877 = vmatpush1.msra.mxu0 0.0
    %878 = vmatprep.subr.mxu0 0.0
    %879 = vmatpush1.msra.mxu0 0.0
    %880 = vmatprep.subr.mxu0 0.0
    %881 = vmatpush1.msra.mxu0 0.0
    %882 = vmatprep.subr.mxu0 0.0
    %883 = vmatpush1.msra.mxu0 0.0
    %884 = vmatprep.subr.mxu0 0.0
    %885 = vmatpush1.msra.mxu0 0.0
    %886 = vmatprep.subr.mxu0 0.0
    %887 = vmatpush1.msra.mxu0 0.0
    %888 = vmatprep.subr.mxu0 0.0
    %889 = vmatpush1.msra.mxu0 0.0
    %890 = vmatprep.mubr.f32.mxu0 0.0
    %891 = vmatmul.mubr.f32.gmra.mrb[0].mxu0 %v754
    %v892 = vpop.f32.mrb[0].mxu0
    %v893 = vadd.f32 0.0, %v892
    %v894 = vpop.f32.mrb[0].mxu0
    %v895 = vadd.f32 0.0, %v894
    %896 = vdwg.mxu0
    %v897 = vadd.f32 %v258, %v822
    %v898 = vadd.f32 %v260, %v824
    %v899 = vadd.f32 %v371, %v893
    %v900 = vadd.f32 %v373, %v895
    %v901 = vadd.f32 %v897, %v116
    %v902 = vadd.f32 %v898, %v120
    %v903 = vadd.f32 %v899, %v124
    %v904 = vadd.f32 %v900, %v128
    %v905 = vxor.u32 %v901, 2147483648
    %v906 = vmul.f32 %v905, 1.442695
    %v907 = vpow.pop %v906
    %v908 = vadd.f32 %v907, 1.0
    %v909 = vrcp.pop %v908
    %v910 = vmul.f32 1.0, %v909
    %v911 = vxor.u32 %v902, 2147483648
    %v912 = vmul.f32 %v911, 1.442695
    %v913 = vpow.pop %v912
    %v914 = vadd.f32 %v913, 1.0
    %v915 = vrcp.pop %v914
    %v916 = vmul.f32 1.0, %v915
    %v917 = vtanh.pop %v903
    %v918 = vxor.u32 %v904, 2147483648
    %v919 = vmul.f32 %v918, 1.442695
    %v920 = vpow.pop %v919
    %v921 = vadd.f32 %v920, 1.0
    %v922 = vrcp.pop %v921
    %v923 = vmul.f32 1.0, %v922
    %v924 = vmul.f32 %v916, %v752
    %v925 = vmul.f32 %v910, %v917
    %v926 = vadd.f32 %v924, %v925
    %v927 = vtanh.pop %v926
    %v928 = vmul.f32 %v923, %v927
    %929 = vmatprep.subr.mxu0 %v48
    %930 = vmatpush1.msra.mxu0 %v47
    %931 = vmatprep.subr.mxu0 %v52
    %932 = vmatpush1.msra.mxu0 %v51
    %933 = vmatprep.subr.mxu0 %v56
    %934 = vmatpush1.msra.mxu0 %v55
    %935 = vmatprep.subr.mxu0 %v60
    %936 = vmatpush1.msra.mxu0 %v59
    %937 = vmatprep.subr.mxu0 %v64
    %938 = vmatpush1.msra.mxu0 %v63
    %939 = vmatprep.subr.mxu0 %v68
    %940 = vmatpush1.msra.mxu0 %v67
    %941 = vmatprep.subr.mxu0 %v72
    %942 = vmatpush1.msra.mxu0 %v71
    %943 = vmatprep.subr.mxu0 %v76
    %944 = vmatpush1.msra.mxu0 %v75
    %945 = vmatprep.subr.mxu0 %v80
    %946 = vmatpush1.msra.mxu0 %v79
    %947 = vmatprep.subr.mxu0 %v84
    %948 = vmatpush1.msra.mxu0 %v83
    %949 = vmatprep.subr.mxu0 %v88
    %950 = vmatpush1.msra.mxu0 %v87
    %951 = vmatprep.subr.mxu0 %v92
    %952 = vmatpush1.msra.mxu0 %v91
    %953 = vmatprep.subr.mxu0 %v96
    %954 = vmatpush1.msra.mxu0 %v95
    %955 = vmatprep.subr.mxu0 %v100
    %956 = vmatpush1.msra.mxu0 %v99
    %957 = vmatprep.subr.mxu0 %v104
    %958 = vmatpush1.msra.mxu0 %v103
    %959 = vmatprep.subr.mxu0 %v108
    %960 = vmatpush1.msra.mxu0 %v107
    %961 = vmatprep.subr.mxu0 0.0
    %962 = vmatpush1.msra.mxu0 0.0
    %963 = vmatprep.subr.mxu0 0.0
    %964 = vmatpush1.msra.mxu0 0.0
    %965 = vmatprep.subr.mxu0 0.0
    %966 = vmatpush1.msra.mxu0 0.0
    %967 = vmatprep.subr.mxu0 0.0
    %968 = vmatpush1.msra.mxu0 0.0
    %969 = vmatprep.subr.mxu0 0.0
    %970 = vmatpush1.msra.mxu0 0.0
    %971 = vmatprep.subr.mxu0 0.0
    %972 = vmatpush1.msra.mxu0 0.0
    %973 = vmatprep.subr.mxu0 0.0
    %974 = vmatpush1.msra.mxu0 0.0
    %975 = vmatprep.subr.mxu0 0.0
    %976 = vmatpush1.msra.mxu0 0.0
    %977 = vmatprep.subr.mxu0 0.0
    %978 = vmatpush1.msra.mxu0 0.0
    %979 = vmatprep.subr.mxu0 0.0
    %980 = vmatpush1.msra.mxu0 0.0
    %981 = vmatprep.subr.mxu0 0.0
    %982 = vmatpush1.msra.mxu0 0.0
    %983 = vmatprep.subr.mxu0 0.0
    %984 = vmatpush1.msra.mxu0 0.0
    %985 = vmatprep.subr.mxu0 0.0
    %986 = vmatpush1.msra.mxu0 0.0
    %987 = vmatprep.subr.mxu0 0.0
    %988 = vmatpush1.msra.mxu0 0.0
    %989 = vmatprep.subr.mxu0 0.0
    %990 = vmatpush1.msra.mxu0 0.0
    %991 = vmatprep.subr.mxu0 0.0
    %992 = vmatpush1.msra.mxu0 0.0
    %993 = vmatprep.mubr.f32.mxu0 0.0
    %994 = vmatmul.mubr.f32.gmra.mrb[0].mxu0 %v928
    %v995 = vpop.f32.mrb[0].mxu0
    %v996 = vadd.f32 0.0, %v995
    %v997 = vpop.f32.mrb[0].mxu0
    %v998 = vadd.f32 0.0, %v997
    %999 = vdwg.mxu0
    %1000 = vmatprep.subr.mxu0 %v50
    %1001 = vmatpush1.msra.mxu0 %v49
    %1002 = vmatprep.subr.mxu0 %v54
    %1003 = vmatpush1.msra.mxu0 %v53
    %1004 = vmatprep.subr.mxu0 %v58
    %1005 = vmatpush1.msra.mxu0 %v57
    %1006 = vmatprep.subr.mxu0 %v62
    %1007 = vmatpush1.msra.mxu0 %v61
    %1008 = vmatprep.subr.mxu0 %v66
    %1009 = vmatpush1.msra.mxu0 %v65
    %1010 = vmatprep.subr.mxu0 %v70
    %1011 = vmatpush1.msra.mxu0 %v69
    %1012 = vmatprep.subr.mxu0 %v74
    %1013 = vmatpush1.msra.mxu0 %v73
    %1014 = vmatprep.subr.mxu0 %v78
    %1015 = vmatpush1.msra.mxu0 %v77
    %1016 = vmatprep.subr.mxu0 %v82
    %1017 = vmatpush1.msra.mxu0 %v81
    %1018 = vmatprep.subr.mxu0 %v86
    %1019 = vmatpush1.msra.mxu0 %v85
    %1020 = vmatprep.subr.mxu0 %v90
    %1021 = vmatpush1.msra.mxu0 %v89
    %1022 = vmatprep.subr.mxu0 %v94
    %1023 = vmatpush1.msra.mxu0 %v93
    %1024 = vmatprep.subr.mxu0 %v98
    %1025 = vmatpush1.msra.mxu0 %v97
    %1026 = vmatprep.subr.mxu0 %v102
    %1027 = vmatpush1.msra.mxu0 %v101
    %1028 = vmatprep.subr.mxu0 %v106
    %1029 = vmatpush1.msra.mxu0 %v105
    %1030 = vmatprep.subr.mxu0 %v110
    %1031 = vmatpush1.msra.mxu0 %v109
    %1032 = vmatprep.subr.mxu0 0.0
    %1033 = vmatpush1.msra.mxu0 0.0
    %1034 = vmatprep.subr.mxu0 0.0
    %1035 = vmatpush1.msra.mxu0 0.0
    %1036 = vmatprep.subr.mxu0 0.0
    %1037 = vmatpush1.msra.mxu0 0.0
    %1038 = vmatprep.subr.mxu0 0.0
    %1039 = vmatpush1.msra.mxu0 0.0
    %1040 = vmatprep.subr.mxu0 0.0
    %1041 = vmatpush1.msra.mxu0 0.0
    %1042 = vmatprep.subr.mxu0 0.0
    %1043 = vmatpush1.msra.mxu0 0.0
    %1044 = vmatprep.subr.mxu0 0.0
    %1045 = vmatpush1.msra.mxu0 0.0
    %1046 = vmatprep.subr.mxu0 0.0
    %1047 = vmatpush1.msra.mxu0 0.0
    %1048 = vmatprep.subr.mxu0 0.0
    %1049 = vmatpush1.msra.mxu0 0.0
    %1050 = vmatprep.subr.mxu0 0.0
    %1051 = vmatpush1.msra.mxu0 0.0
    %1052 = vmatprep.subr.mxu0 0.0
    %1053 = vmatpush1.msra.mxu0 0.0
    %1054 = vmatprep.subr.mxu0 0.0
    %1055 = vmatpush1.msra.mxu0 0.0
    %1056 = vmatprep.subr.mxu0 0.0
    %1057 = vmatpush1.msra.mxu0 0.0
    %1058 = vmatprep.subr.mxu0 0.0
    %1059 = vmatpush1.msra.mxu0 0.0
    %1060 = vmatprep.subr.mxu0 0.0
    %1061 = vmatpush1.msra.mxu0 0.0
    %1062 = vmatprep.subr.mxu0 0.0
    %1063 = vmatpush1.msra.mxu0 0.0
    %1064 = vmatprep.mubr.f32.mxu0 0.0
    %1065 = vmatmul.mubr.f32.gmra.mrb[0].mxu0 %v928
    %v1066 = vpop.f32.mrb[0].mxu0
    %v1067 = vadd.f32 0.0, %v1066
    %v1068 = vpop.f32.mrb[0].mxu0
    %v1069 = vadd.f32 0.0, %v1068
    %1070 = vdwg.mxu0
    %v1071 = vadd.f32 %v264, %v996
    %v1072 = vadd.f32 %v266, %v998
    %v1073 = vadd.f32 %v377, %v1067
    %v1074 = vadd.f32 %v379, %v1069
    %v1075 = vadd.f32 %v1071, %v116
    %v1076 = vadd.f32 %v1072, %v120
    %v1077 = vadd.f32 %v1073, %v124
    %v1078 = vadd.f32 %v1074, %v128
    %v1079 = vxor.u32 %v1075, 2147483648
    %v1080 = vmul.f32 %v1079, 1.442695
    %v1081 = vpow.pop %v1080
    %v1082 = vadd.f32 %v1081, 1.0
    %v1083 = vrcp.pop %v1082
    %v1084 = vmul.f32 1.0, %v1083
    %v1085 = vxor.u32 %v1076, 2147483648
    %v1086 = vmul.f32 %v1085, 1.442695
    %v1087 = vpow.pop %v1086
    %v1088 = vadd.f32 %v1087, 1.0
    %v1089 = vrcp.pop %v1088
    %v1090 = vmul.f32 1.0, %v1089
    %v1091 = vtanh.pop %v1077
    %v1092 = vxor.u32 %v1078, 2147483648
    %v1093 = vmul.f32 %v1092, 1.442695
    %v1094 = vpow.pop %v1093
    %v1095 = vadd.f32 %v1094, 1.0
    %v1096 = vrcp.pop %v1095
    %v1097 = vmul.f32 1.0, %v1096
    %v1098 = vmul.f32 %v1090, %v926
    %v1099 = vmul.f32 %v1084, %v1091
    %v1100 = vadd.f32 %v1098, %v1099
    %v1101 = vtanh.pop %v1100
    %v1102 = vmul.f32 %v1097, %v1101
    %1103 = vmatprep.subr.mxu0 %v48
    %1104 = vmatpush1.msra.mxu0 %v47
    %1105 = vmatprep.subr.mxu0 %v52
    %1106 = vmatpush1.msra.mxu0 %v51
    %1107 = vmatprep.subr.mxu0 %v56
    %1108 = vmatpush1.msra.mxu0 %v55
    %1109 = vmatprep.subr.mxu0 %v60
    %1110 = vmatpush1.msra.mxu0 %v59
    %1111 = vmatprep.subr.mxu0 %v64
    %1112 = vmatpush1.msra.mxu0 %v63
    %1113 = vmatprep.subr.mxu0 %v68
    %1114 = vmatpush1.msra.mxu0 %v67
    %1115 = vmatprep.subr.mxu0 %v72
    %1116 = vmatpush1.msra.mxu0 %v71
    %1117 = vmatprep.subr.mxu0 %v76
    %1118 = vmatpush1.msra.mxu0 %v75
    %1119 = vmatprep.subr.mxu0 %v80
    %1120 = vmatpush1.msra.mxu0 %v79
    %1121 = vmatprep.subr.mxu0 %v84
    %1122 = vmatpush1.msra.mxu0 %v83
    %1123 = vmatprep.subr.mxu0 %v88
    %1124 = vmatpush1.msra.mxu0 %v87
    %1125 = vmatprep.subr.mxu0 %v92
    %1126 = vmatpush1.msra.mxu0 %v91
    %1127 = vmatprep.subr.mxu0 %v96
    %1128 = vmatpush1.msra.mxu0 %v95
    %1129 = vmatprep.subr.mxu0 %v100
    %1130 = vmatpush1.msra.mxu0 %v99
    %1131 = vmatprep.subr.mxu0 %v104
    %1132 = vmatpush1.msra.mxu0 %v103
    %1133 = vmatprep.subr.mxu0 %v108
    %1134 = vmatpush1.msra.mxu0 %v107
    %1135 = vmatprep.subr.mxu0 0.0
    %1136 = vmatpush1.msra.mxu0 0.0
    %1137 = vmatprep.subr.mxu0 0.0
    %1138 = vmatpush1.msra.mxu0 0.0
    %1139 = vmatprep.subr.mxu0 0.0
    %1140 = vmatpush1.msra.mxu0 0.0
    %1141 = vmatprep.subr.mxu0 0.0
    %1142 = vmatpush1.msra.mxu0 0.0
    %1143 = vmatprep.subr.mxu0 0.0
    %1144 = vmatpush1.msra.mxu0 0.0
    %1145 = vmatprep.subr.mxu0 0.0
    %1146 = vmatpush1.msra.mxu0 0.0
    %1147 = vmatprep.subr.mxu0 0.0
    %1148 = vmatpush1.msra.mxu0 0.0
    %1149 = vmatprep.subr.mxu0 0.0
    %1150 = vmatpush1.msra.mxu0 0.0
    %1151 = vmatprep.subr.mxu0 0.0
    %1152 = vmatpush1.msra.mxu0 0.0
    %1153 = vmatprep.subr.mxu0 0.0
    %1154 = vmatpush1.msra.mxu0 0.0
    %1155 = vmatprep.subr.mxu0 0.0
    %1156 = vmatpush1.msra.mxu0 0.0
    %1157 = vmatprep.subr.mxu0 0.0
    %1158 = vmatpush1.msra.mxu0 0.0
    %1159 = vmatprep.subr.mxu0 0.0
    %1160 = vmatpush1.msra.mxu0 0.0
    %1161 = vmatprep.subr.mxu0 0.0
    %1162 = vmatpush1.msra.mxu0 0.0
    %1163 = vmatprep.subr.mxu0 0.0
    %1164 = vmatpush1.msra.mxu0 0.0
    %1165 = vmatprep.subr.mxu0 0.0
    %1166 = vmatpush1.msra.mxu0 0.0
    %1167 = vmatprep.mubr.f32.mxu0 0.0
    %1168 = vmatmul.mubr.f32.gmra.mrb[0].mxu0 %v1102
    %v1169 = vpop.f32.mrb[0].mxu0
    %v1170 = vadd.f32 0.0, %v1169
    %v1171 = vpop.f32.mrb[0].mxu0
    %v1172 = vadd.f32 0.0, %v1171
    %1173 = vdwg.mxu0
    %1174 = vmatprep.subr.mxu0 %v50
    %1175 = vmatpush1.msra.mxu0 %v49
    %1176 = vmatprep.subr.mxu0 %v54
    %1177 = vmatpush1.msra.mxu0 %v53
    %1178 = vmatprep.subr.mxu0 %v58
    %1179 = vmatpush1.msra.mxu0 %v57
    %1180 = vmatprep.subr.mxu0 %v62
    %1181 = vmatpush1.msra.mxu0 %v61
    %1182 = vmatprep.subr.mxu0 %v66
    %1183 = vmatpush1.msra.mxu0 %v65
    %1184 = vmatprep.subr.mxu0 %v70
    %1185 = vmatpush1.msra.mxu0 %v69
    %1186 = vmatprep.subr.mxu0 %v74
    %1187 = vmatpush1.msra.mxu0 %v73
    %1188 = vmatprep.subr.mxu0 %v78
    %1189 = vmatpush1.msra.mxu0 %v77
    %1190 = vmatprep.subr.mxu0 %v82
    %1191 = vmatpush1.msra.mxu0 %v81
    %1192 = vmatprep.subr.mxu0 %v86
    %1193 = vmatpush1.msra.mxu0 %v85
    %1194 = vmatprep.subr.mxu0 %v90
    %1195 = vmatpush1.msra.mxu0 %v89
    %1196 = vmatprep.subr.mxu0 %v94
    %1197 = vmatpush1.msra.mxu0 %v93
    %1198 = vmatprep.subr.mxu0 %v98
    %1199 = vmatpush1.msra.mxu0 %v97
    %1200 = vmatprep.subr.mxu0 %v102
    %1201 = vmatpush1.msra.mxu0 %v101
    %1202 = vmatprep.subr.mxu0 %v106
    %1203 = vmatpush1.msra.mxu0 %v105
    %1204 = vmatprep.subr.mxu0 %v110
    %1205 = vmatpush1.msra.mxu0 %v109
    %1206 = vmatprep.subr.mxu0 0.0
    %1207 = vmatpush1.msra.mxu0 0.0
    %1208 = vmatprep.subr.mxu0 0.0
    %1209 = vmatpush1.msra.mxu0 0.0
    %1210 = vmatprep.subr.mxu0 0.0
    %1211 = vmatpush1.msra.mxu0 0.0
    %1212 = vmatprep.subr.mxu0 0.0
    %1213 = vmatpush1.msra.mxu0 0.0
    %1214 = vmatprep.subr.mxu0 0.0
    %1215 = vmatpush1.msra.mxu0 0.0
    %1216 = vmatprep.subr.mxu0 0.0
    %1217 = vmatpush1.msra.mxu0 0.0
    %1218 = vmatprep.subr.mxu0 0.0
    %1219 = vmatpush1.msra.mxu0 0.0
    %1220 = vmatprep.subr.mxu0 0.0
    %1221 = vmatpush1.msra.mxu0 0.0
    %1222 = vmatprep.subr.mxu0 0.0
    %1223 = vmatpush1.msra.mxu0 0.0
    %1224 = vmatprep.subr.mxu0 0.0
    %1225 = vmatpush1.msra.mxu0 0.0
    %1226 = vmatprep.subr.mxu0 0.0
    %1227 = vmatpush1.msra.mxu0 0.0
    %1228 = vmatprep.subr.mxu0 0.0
    %1229 = vmatpush1.msra.mxu0 0.0
    %1230 = vmatprep.subr.mxu0 0.0
    %1231 = vmatpush1.msra.mxu0 0.0
    %1232 = vmatprep.subr.mxu0 0.0
    %1233 = vmatpush1.msra.mxu0 0.0
    %1234 = vmatprep.subr.mxu0 0.0
    %1235 = vmatpush1.msra.mxu0 0.0
    %1236 = vmatprep.subr.mxu0 0.0
    %1237 = vmatpush1.msra.mxu0 0.0
    %1238 = vmatprep.mubr.f32.mxu0 0.0
    %1239 = vmatmul.mubr.f32.gmra.mrb[0].mxu0 %v1102
    %v1240 = vpop.f32.mrb[0].mxu0
    %v1241 = vadd.f32 0.0, %v1240
    %v1242 = vpop.f32.mrb[0].mxu0
    %v1243 = vadd.f32 0.0, %v1242
    %1244 = vdwg.mxu0
    %v1245 = vadd.f32 %v270, %v1170
    %v1246 = vadd.f32 %v272, %v1172
    %v1247 = vadd.f32 %v383, %v1241
    %v1248 = vadd.f32 %v385, %v1243
    %v1249 = vadd.f32 %v1245, %v116
    %v1250 = vadd.f32 %v1246, %v120
    %v1251 = vadd.f32 %v1247, %v124
    %v1252 = vadd.f32 %v1248, %v128
    %v1253 = vxor.u32 %v1249, 2147483648
    %v1254 = vmul.f32 %v1253, 1.442695
    %v1255 = vpow.pop %v1254
    %v1256 = vadd.f32 %v1255, 1.0
    %v1257 = vrcp.pop %v1256
    %v1258 = vmul.f32 1.0, %v1257
    %v1259 = vxor.u32 %v1250, 2147483648
    %v1260 = vmul.f32 %v1259, 1.442695
    %v1261 = vpow.pop %v1260
    %v1262 = vadd.f32 %v1261, 1.0
    %v1263 = vrcp.pop %v1262
    %v1264 = vmul.f32 1.0, %v1263
    %v1265 = vtanh.pop %v1251
    %v1266 = vxor.u32 %v1252, 2147483648
    %v1267 = vmul.f32 %v1266, 1.442695
    %v1268 = vpow.pop %v1267
    %v1269 = vadd.f32 %v1268, 1.0
    %v1270 = vrcp.pop %v1269
    %v1271 = vmul.f32 1.0, %v1270
    %v1272 = vmul.f32 %v1264, %v1100
    %v1273 = vmul.f32 %v1258, %v1265
    %v1274 = vadd.f32 %v1272, %v1273
    %v1275 = vtanh.pop %v1274
    %v1276 = vmul.f32 %v1271, %v1275
    %1277 = vmatprep.subr.mxu0 %v48
    %1278 = vmatpush1.msra.mxu0 %v47
    %1279 = vmatprep.subr.mxu0 %v52
    %1280 = vmatpush1.msra.mxu0 %v51
    %1281 = vmatprep.subr.mxu0 %v56
    %1282 = vmatpush1.msra.mxu0 %v55
    %1283 = vmatprep.subr.mxu0 %v60
    %1284 = vmatpush1.msra.mxu0 %v59
    %1285 = vmatprep.subr.mxu0 %v64
    %1286 = vmatpush1.msra.mxu0 %v63
    %1287 = vmatprep.subr.mxu0 %v68
    %1288 = vmatpush1.msra.mxu0 %v67
    %1289 = vmatprep.subr.mxu0 %v72
    %1290 = vmatpush1.msra.mxu0 %v71
    %1291 = vmatprep.subr.mxu0 %v76
    %1292 = vmatpush1.msra.mxu0 %v75
    %1293 = vmatprep.subr.mxu0 %v80
    %1294 = vmatpush1.msra.mxu0 %v79
    %1295 = vmatprep.subr.mxu0 %v84
    %1296 = vmatpush1.msra.mxu0 %v83
    %1297 = vmatprep.subr.mxu0 %v88
    %1298 = vmatpush1.msra.mxu0 %v87
    %1299 = vmatprep.subr.mxu0 %v92
    %1300 = vmatpush1.msra.mxu0 %v91
    %1301 = vmatprep.subr.mxu0 %v96
    %1302 = vmatpush1.msra.mxu0 %v95
    %1303 = vmatprep.subr.mxu0 %v100
    %1304 = vmatpush1.msra.mxu0 %v99
    %1305 = vmatprep.subr.mxu0 %v104
    %1306 = vmatpush1.msra.mxu0 %v103
    %1307 = vmatprep.subr.mxu0 %v108
    %1308 = vmatpush1.msra.mxu0 %v107
    %1309 = vmatprep.subr.mxu0 0.0
    %1310 = vmatpush1.msra.mxu0 0.0
    %1311 = vmatprep.subr.mxu0 0.0
    %1312 = vmatpush1.msra.mxu0 0.0
    %1313 = vmatprep.subr.mxu0 0.0
    %1314 = vmatpush1.msra.mxu0 0.0
    %1315 = vmatprep.subr.mxu0 0.0
    %1316 = vmatpush1.msra.mxu0 0.0
    %1317 = vmatprep.subr.mxu0 0.0
    %1318 = vmatpush1.msra.mxu0 0.0
    %1319 = vmatprep.subr.mxu0 0.0
    %1320 = vmatpush1.msra.mxu0 0.0
    %1321 = vmatprep.subr.mxu0 0.0
    %1322 = vmatpush1.msra.mxu0 0.0
    %1323 = vmatprep.subr.mxu0 0.0
    %1324 = vmatpush1.msra.mxu0 0.0
    %1325 = vmatprep.subr.mxu0 0.0
    %1326 = vmatpush1.msra.mxu0 0.0
    %1327 = vmatprep.subr.mxu0 0.0
    %1328 = vmatpush1.msra.mxu0 0.0
    %1329 = vmatprep.subr.mxu0 0.0
    %1330 = vmatpush1.msra.mxu0 0.0
    %1331 = vmatprep.subr.mxu0 0.0
    %1332 = vmatpush1.msra.mxu0 0.0
    %1333 = vmatprep.subr.mxu0 0.0
    %1334 = vmatpush1.msra.mxu0 0.0
    %1335 = vmatprep.subr.mxu0 0.0
    %1336 = vmatpush1.msra.mxu0 0.0
    %1337 = vmatprep.subr.mxu0 0.0
    %1338 = vmatpush1.msra.mxu0 0.0
    %1339 = vmatprep.subr.mxu0 0.0
    %1340 = vmatpush1.msra.mxu0 0.0
    %1341 = vmatprep.mubr.f32.mxu0 0.0
    %1342 = vmatmul.mubr.f32.gmra.mrb[0].mxu0 %v1276
    %v1343 = vpop.f32.mrb[0].mxu0
    %v1344 = vadd.f32 0.0, %v1343
    %v1345 = vpop.f32.mrb[0].mxu0
    %v1346 = vadd.f32 0.0, %v1345
    %1347 = vdwg.mxu0
    %1348 = vmatprep.subr.mxu0 %v50
    %1349 = vmatpush1.msra.mxu0 %v49
    %1350 = vmatprep.subr.mxu0 %v54
    %1351 = vmatpush1.msra.mxu0 %v53
    %1352 = vmatprep.subr.mxu0 %v58
    %1353 = vmatpush1.msra.mxu0 %v57
    %1354 = vmatprep.subr.mxu0 %v62
    %1355 = vmatpush1.msra.mxu0 %v61
    %1356 = vmatprep.subr.mxu0 %v66
    %1357 = vmatpush1.msra.mxu0 %v65
    %1358 = vmatprep.subr.mxu0 %v70
    %1359 = vmatpush1.msra.mxu0 %v69
    %1360 = vmatprep.subr.mxu0 %v74
    %1361 = vmatpush1.msra.mxu0 %v73
    %1362 = vmatprep.subr.mxu0 %v78
    %1363 = vmatpush1.msra.mxu0 %v77
    %1364 = vmatprep.subr.mxu0 %v82
    %1365 = vmatpush1.msra.mxu0 %v81
    %1366 = vmatprep.subr.mxu0 %v86
    %1367 = vmatpush1.msra.mxu0 %v85
    %1368 = vmatprep.subr.mxu0 %v90
    %1369 = vmatpush1.msra.mxu0 %v89
    %1370 = vmatprep.subr.mxu0 %v94
    %1371 = vmatpush1.msra.mxu0 %v93
    %1372 = vmatprep.subr.mxu0 %v98
    %1373 = vmatpush1.msra.mxu0 %v97
    %1374 = vmatprep.subr.mxu0 %v102
    %1375 = vmatpush1.msra.mxu0 %v101
    %1376 = vmatprep.subr.mxu0 %v106
    %1377 = vmatpush1.msra.mxu0 %v105
    %1378 = vmatprep.subr.mxu0 %v110
    %1379 = vmatpush1.msra.mxu0 %v109
    %1380 = vmatprep.subr.mxu0 0.0
    %1381 = vmatpush1.msra.mxu0 0.0
    %1382 = vmatprep.subr.mxu0 0.0
    %1383 = vmatpush1.msra.mxu0 0.0
    %1384 = vmatprep.subr.mxu0 0.0
    %1385 = vmatpush1.msra.mxu0 0.0
    %1386 = vmatprep.subr.mxu0 0.0
    %1387 = vmatpush1.msra.mxu0 0.0
    %1388 = vmatprep.subr.mxu0 0.0
    %1389 = vmatpush1.msra.mxu0 0.0
    %1390 = vmatprep.subr.mxu0 0.0
    %1391 = vmatpush1.msra.mxu0 0.0
    %1392 = vmatprep.subr.mxu0 0.0
    %1393 = vmatpush1.msra.mxu0 0.0
    %1394 = vmatprep.subr.mxu0 0.0
    %1395 = vmatpush1.msra.mxu0 0.0
    %1396 = vmatprep.subr.mxu0 0.0
    %1397 = vmatpush1.msra.mxu0 0.0
    %1398 = vmatprep.subr.mxu0 0.0
    %1399 = vmatpush1.msra.mxu0 0.0
    %1400 = vmatprep.subr.mxu0 0.0
    %1401 = vmatpush1.msra.mxu0 0.0
    %1402 = vmatprep.subr.mxu0 0.0
    %1403 = vmatpush1.msra.mxu0 0.0
    %1404 = vmatprep.subr.mxu0 0.0
    %1405 = vmatpush1.msra.mxu0 0.0
    %1406 = vmatprep.subr.mxu0 0.0
    %1407 = vmatpush1.msra.mxu0 0.0
    %1408 = vmatprep.subr.mxu0 0.0
    %1409 = vmatpush1.msra.mxu0 0.0
    %1410 = vmatprep.subr.mxu0 0.0
    %1411 = vmatpush1.msra.mxu0 0.0
    %1412 = vmatprep.mubr.f32.mxu0 0.0
    %1413 = vmatmul.mubr.f32.gmra.mrb[0].mxu0 %v1276
    %v1414 = vpop.f32.mrb[0].mxu0
    %v1415 = vadd.f32 0.0, %v1414
    %v1416 = vpop.f32.mrb[0].mxu0
    %v1417 = vadd.f32 0.0, %v1416
    %1418 = vdwg.mxu0
    %v1419 = vadd.f32 %v276, %v1344
    %v1420 = vadd.f32 %v278, %v1346
    %v1421 = vadd.f32 %v389, %v1415
    %v1422 = vadd.f32 %v391, %v1417
    %v1423 = vadd.f32 %v1419, %v116
    %v1424 = vadd.f32 %v1420, %v120
    %v1425 = vadd.f32 %v1421, %v124
    %v1426 = vadd.f32 %v1422, %v128
    %v1427 = vxor.u32 %v1423, 2147483648
    %v1428 = vmul.f32 %v1427, 1.442695
    %v1429 = vpow.pop %v1428
    %v1430 = vadd.f32 %v1429, 1.0
    %v1431 = vrcp.pop %v1430
    %v1432 = vmul.f32 1.0, %v1431
    %v1433 = vxor.u32 %v1424, 2147483648
    %v1434 = vmul.f32 %v1433, 1.442695
    %v1435 = vpow.pop %v1434
    %v1436 = vadd.f32 %v1435, 1.0
    %v1437 = vrcp.pop %v1436
    %v1438 = vmul.f32 1.0, %v1437
    %v1439 = vtanh.pop %v1425
    %v1440 = vxor.u32 %v1426, 2147483648
    %v1441 = vmul.f32 %v1440, 1.442695
    %v1442 = vpow.pop %v1441
    %v1443 = vadd.f32 %v1442, 1.0
    %v1444 = vrcp.pop %v1443
    %v1445 = vmul.f32 1.0, %v1444
    %v1446 = vmul.f32 %v1438, %v1274
    %v1447 = vmul.f32 %v1432, %v1439
    %v1448 = vadd.f32 %v1446, %v1447
    %v1449 = vtanh.pop %v1448
    %v1450 = vmul.f32 %v1445, %v1449
    %1451 = vmatprep.subr.mxu0 %v48
    %1452 = vmatpush1.msra.mxu0 %v47
    %1453 = vmatprep.subr.mxu0 %v52
    %1454 = vmatpush1.msra.mxu0 %v51
    %1455 = vmatprep.subr.mxu0 %v56
    %1456 = vmatpush1.msra.mxu0 %v55
    %1457 = vmatprep.subr.mxu0 %v60
    %1458 = vmatpush1.msra.mxu0 %v59
    %1459 = vmatprep.subr.mxu0 %v64
    %1460 = vmatpush1.msra.mxu0 %v63
    %1461 = vmatprep.subr.mxu0 %v68
    %1462 = vmatpush1.msra.mxu0 %v67
    %1463 = vmatprep.subr.mxu0 %v72
    %1464 = vmatpush1.msra.mxu0 %v71
    %1465 = vmatprep.subr.mxu0 %v76
    %1466 = vmatpush1.msra.mxu0 %v75
    %1467 = vmatprep.subr.mxu0 %v80
    %1468 = vmatpush1.msra.mxu0 %v79
    %1469 = vmatprep.subr.mxu0 %v84
    %1470 = vmatpush1.msra.mxu0 %v83
    %1471 = vmatprep.subr.mxu0 %v88
    %1472 = vmatpush1.msra.mxu0 %v87
    %1473 = vmatprep.subr.mxu0 %v92
    %1474 = vmatpush1.msra.mxu0 %v91
    %1475 = vmatprep.subr.mxu0 %v96
    %1476 = vmatpush1.msra.mxu0 %v95
    %1477 = vmatprep.subr.mxu0 %v100
    %1478 = vmatpush1.msra.mxu0 %v99
    %1479 = vmatprep.subr.mxu0 %v104
    %1480 = vmatpush1.msra.mxu0 %v103
    %1481 = vmatprep.subr.mxu0 %v108
    %1482 = vmatpush1.msra.mxu0 %v107
    %1483 = vmatprep.subr.mxu0 0.0
    %1484 = vmatpush1.msra.mxu0 0.0
    %1485 = vmatprep.subr.mxu0 0.0
    %1486 = vmatpush1.msra.mxu0 0.0
    %1487 = vmatprep.subr.mxu0 0.0
    %1488 = vmatpush1.msra.mxu0 0.0
    %1489 = vmatprep.subr.mxu0 0.0
    %1490 = vmatpush1.msra.mxu0 0.0
    %1491 = vmatprep.subr.mxu0 0.0
    %1492 = vmatpush1.msra.mxu0 0.0
    %1493 = vmatprep.subr.mxu0 0.0
    %1494 = vmatpush1.msra.mxu0 0.0
    %1495 = vmatprep.subr.mxu0 0.0
    %1496 = vmatpush1.msra.mxu0 0.0
    %1497 = vmatprep.subr.mxu0 0.0
    %1498 = vmatpush1.msra.mxu0 0.0
    %1499 = vmatprep.subr.mxu0 0.0
    %1500 = vmatpush1.msra.mxu0 0.0
    %1501 = vmatprep.subr.mxu0 0.0
    %1502 = vmatpush1.msra.mxu0 0.0
    %1503 = vmatprep.subr.mxu0 0.0
    %1504 = vmatpush1.msra.mxu0 0.0
    %1505 = vmatprep.subr.mxu0 0.0
    %1506 = vmatpush1.msra.mxu0 0.0
    %1507 = vmatprep.subr.mxu0 0.0
    %1508 = vmatpush1.msra.mxu0 0.0
    %1509 = vmatprep.subr.mxu0 0.0
    %1510 = vmatpush1.msra.mxu0 0.0
    %1511 = vmatprep.subr.mxu0 0.0
    %1512 = vmatpush1.msra.mxu0 0.0
    %1513 = vmatprep.subr.mxu0 0.0
    %1514 = vmatpush1.msra.mxu0 0.0
    %1515 = vmatprep.mubr.f32.mxu0 0.0
    %1516 = vmatmul.mubr.f32.gmra.mrb[0].mxu0 %v1450
    %v1517 = vpop.f32.mrb[0].mxu0
    %v1518 = vadd.f32 0.0, %v1517
    %v1519 = vpop.f32.mrb[0].mxu0
    %v1520 = vadd.f32 0.0, %v1519
    %1521 = vdwg.mxu0
    %1522 = vmatprep.subr.mxu0 %v50
    %1523 = vmatpush1.msra.mxu0 %v49
    %1524 = vmatprep.subr.mxu0 %v54
    %1525 = vmatpush1.msra.mxu0 %v53
    %1526 = vmatprep.subr.mxu0 %v58
    %1527 = vmatpush1.msra.mxu0 %v57
    %1528 = vmatprep.subr.mxu0 %v62
    %1529 = vmatpush1.msra.mxu0 %v61
    %1530 = vmatprep.subr.mxu0 %v66
    %1531 = vmatpush1.msra.mxu0 %v65
    %1532 = vmatprep.subr.mxu0 %v70
    %1533 = vmatpush1.msra.mxu0 %v69
    %1534 = vmatprep.subr.mxu0 %v74
    %1535 = vmatpush1.msra.mxu0 %v73
    %1536 = vmatprep.subr.mxu0 %v78
    %1537 = vmatpush1.msra.mxu0 %v77
    %1538 = vmatprep.subr.mxu0 %v82
    %1539 = vmatpush1.msra.mxu0 %v81
    %1540 = vmatprep.subr.mxu0 %v86
    %1541 = vmatpush1.msra.mxu0 %v85
    %1542 = vmatprep.subr.mxu0 %v90
    %1543 = vmatpush1.msra.mxu0 %v89
    %1544 = vmatprep.subr.mxu0 %v94
    %1545 = vmatpush1.msra.mxu0 %v93
    %1546 = vmatprep.subr.mxu0 %v98
    %1547 = vmatpush1.msra.mxu0 %v97
    %1548 = vmatprep.subr.mxu0 %v102
    %1549 = vmatpush1.msra.mxu0 %v101
    %1550 = vmatprep.subr.mxu0 %v106
    %1551 = vmatpush1.msra.mxu0 %v105
    %1552 = vmatprep.subr.mxu0 %v110
    %1553 = vmatpush1.msra.mxu0 %v109
    %1554 = vmatprep.subr.mxu0 0.0
    %1555 = vmatpush1.msra.mxu0 0.0
    %1556 = vmatprep.subr.mxu0 0.0
    %1557 = vmatpush1.msra.mxu0 0.0
    %1558 = vmatprep.subr.mxu0 0.0
    %1559 = vmatpush1.msra.mxu0 0.0
    %1560 = vmatprep.subr.mxu0 0.0
    %1561 = vmatpush1.msra.mxu0 0.0
    %1562 = vmatprep.subr.mxu0 0.0
    %1563 = vmatpush1.msra.mxu0 0.0
    %1564 = vmatprep.subr.mxu0 0.0
    %1565 = vmatpush1.msra.mxu0 0.0
    %1566 = vmatprep.subr.mxu0 0.0
    %1567 = vmatpush1.msra.mxu0 0.0
    %1568 = vmatprep.subr.mxu0 0.0
    %1569 = vmatpush1.msra.mxu0 0.0
    %1570 = vmatprep.subr.mxu0 0.0
    %1571 = vmatpush1.msra.mxu0 0.0
    %1572 = vmatprep.subr.mxu0 0.0
    %1573 = vmatpush1.msra.mxu0 0.0
    %1574 = vmatprep.subr.mxu0 0.0
    %1575 = vmatpush1.msra.mxu0 0.0
    %1576 = vmatprep.subr.mxu0 0.0
    %1577 = vmatpush1.msra.mxu0 0.0
    %1578 = vmatprep.subr.mxu0 0.0
    %1579 = vmatpush1.msra.mxu0 0.0
    %1580 = vmatprep.subr.mxu0 0.0
    %1581 = vmatpush1.msra.mxu0 0.0
    %1582 = vmatprep.subr.mxu0 0.0
    %1583 = vmatpush1.msra.mxu0 0.0
    %1584 = vmatprep.subr.mxu0 0.0
    %1585 = vmatpush1.msra.mxu0 0.0
    %1586 = vmatprep.mubr.f32.mxu0 0.0
    %1587 = vmatmul.mubr.f32.gmra.mrb[0].mxu0 %v1450
    %v1588 = vpop.f32.mrb[0].mxu0
    %v1589 = vadd.f32 0.0, %v1588
    %v1590 = vpop.f32.mrb[0].mxu0
    %v1591 = vadd.f32 0.0, %v1590
    %1592 = vdwg.mxu0
    %v1593 = vadd.f32 %v282, %v1518
    %v1594 = vadd.f32 %v284, %v1520
    %v1595 = vadd.f32 %v395, %v1589
    %v1596 = vadd.f32 %v397, %v1591
    %v1597 = vadd.f32 %v1593, %v116
    %v1598 = vadd.f32 %v1594, %v120
    %v1599 = vadd.f32 %v1595, %v124
    %v1600 = vadd.f32 %v1596, %v128
    %v1601 = vxor.u32 %v1597, 2147483648
    %v1602 = vmul.f32 %v1601, 1.442695
    %v1603 = vpow.pop %v1602
    %v1604 = vadd.f32 %v1603, 1.0
    %v1605 = vrcp.pop %v1604
    %v1606 = vmul.f32 1.0, %v1605
    %v1607 = vxor.u32 %v1598, 2147483648
    %v1608 = vmul.f32 %v1607, 1.442695
    %v1609 = vpow.pop %v1608
    %v1610 = vadd.f32 %v1609, 1.0
    %v1611 = vrcp.pop %v1610
    %v1612 = vmul.f32 1.0, %v1611
    %v1613 = vtanh.pop %v1599
    %v1614 = vxor.u32 %v1600, 2147483648
    %v1615 = vmul.f32 %v1614, 1.442695
    %v1616 = vpow.pop %v1615
    %v1617 = vadd.f32 %v1616, 1.0
    %v1618 = vrcp.pop %v1617
    %v1619 = vmul.f32 1.0, %v1618
    %v1620 = vmul.f32 %v1612, %v1448
    %v1621 = vmul.f32 %v1606, %v1613
    %v1622 = vadd.f32 %v1620, %v1621
    %v1623 = vtanh.pop %v1622
    %v1624 = vmul.f32 %v1619, %v1623
    %1625 = vmatprep.subr.mxu0 %v48
    %1626 = vmatpush1.msra.mxu0 %v47
    %1627 = vmatprep.subr.mxu0 %v52
    %1628 = vmatpush1.msra.mxu0 %v51
    %1629 = vmatprep.subr.mxu0 %v56
    %1630 = vmatpush1.msra.mxu0 %v55
    %1631 = vmatprep.subr.mxu0 %v60
    %1632 = vmatpush1.msra.mxu0 %v59
    %1633 = vmatprep.subr.mxu0 %v64
    %1634 = vmatpush1.msra.mxu0 %v63
    %1635 = vmatprep.subr.mxu0 %v68
    %1636 = vmatpush1.msra.mxu0 %v67
    %1637 = vmatprep.subr.mxu0 %v72
    %1638 = vmatpush1.msra.mxu0 %v71
    %1639 = vmatprep.subr.mxu0 %v76
    %1640 = vmatpush1.msra.mxu0 %v75
    %1641 = vmatprep.subr.mxu0 %v80
    %1642 = vmatpush1.msra.mxu0 %v79
    %1643 = vmatprep.subr.mxu0 %v84
    %1644 = vmatpush1.msra.mxu0 %v83
    %1645 = vmatprep.subr.mxu0 %v88
    %1646 = vmatpush1.msra.mxu0 %v87
    %1647 = vmatprep.subr.mxu0 %v92
    %1648 = vmatpush1.msra.mxu0 %v91
    %1649 = vmatprep.subr.mxu0 %v96
    %1650 = vmatpush1.msra.mxu0 %v95
    %1651 = vmatprep.subr.mxu0 %v100
    %1652 = vmatpush1.msra.mxu0 %v99
    %1653 = vmatprep.subr.mxu0 %v104
    %1654 = vmatpush1.msra.mxu0 %v103
    %1655 = vmatprep.subr.mxu0 %v108
    %1656 = vmatpush1.msra.mxu0 %v107
    %1657 = vmatprep.subr.mxu0 0.0
    %1658 = vmatpush1.msra.mxu0 0.0
    %1659 = vmatprep.subr.mxu0 0.0
    %1660 = vmatpush1.msra.mxu0 0.0
    %1661 = vmatprep.subr.mxu0 0.0
    %1662 = vmatpush1.msra.mxu0 0.0
    %1663 = vmatprep.subr.mxu0 0.0
    %1664 = vmatpush1.msra.mxu0 0.0
    %1665 = vmatprep.subr.mxu0 0.0
    %1666 = vmatpush1.msra.mxu0 0.0
    %1667 = vmatprep.subr.mxu0 0.0
    %1668 = vmatpush1.msra.mxu0 0.0
    %1669 = vmatprep.subr.mxu0 0.0
    %1670 = vmatpush1.msra.mxu0 0.0
    %1671 = vmatprep.subr.mxu0 0.0
    %1672 = vmatpush1.msra.mxu0 0.0
    %1673 = vmatprep.subr.mxu0 0.0
    %1674 = vmatpush1.msra.mxu0 0.0
    %1675 = vmatprep.subr.mxu0 0.0
    %1676 = vmatpush1.msra.mxu0 0.0
    %1677 = vmatprep.subr.mxu0 0.0
    %1678 = vmatpush1.msra.mxu0 0.0
    %1679 = vmatprep.subr.mxu0 0.0
    %1680 = vmatpush1.msra.mxu0 0.0
    %1681 = vmatprep.subr.mxu0 0.0
    %1682 = vmatpush1.msra.mxu0 0.0
    %1683 = vmatprep.subr.mxu0 0.0
    %1684 = vmatpush1.msra.mxu0 0.0
    %1685 = vmatprep.subr.mxu0 0.0
    %1686 = vmatpush1.msra.mxu0 0.0
    %1687 = vmatprep.subr.mxu0 0.0
    %1688 = vmatpush1.msra.mxu0 0.0
    %1689 = vmatprep.mubr.f32.mxu0 0.0
    %1690 = vmatmul.mubr.f32.gmra.mrb[0].mxu0 %v1624
    %v1691 = vpop.f32.mrb[0].mxu0
    %v1692 = vadd.f32 0.0, %v1691
    %v1693 = vpop.f32.mrb[0].mxu0
    %v1694 = vadd.f32 0.0, %v1693
    %1695 = vdwg.mxu0
    %1696 = vmatprep.subr.mxu0 %v50
    %1697 = vmatpush1.msra.mxu0 %v49
    %1698 = vmatprep.subr.mxu0 %v54
    %1699 = vmatpush1.msra.mxu0 %v53
    %1700 = vmatprep.subr.mxu0 %v58
    %1701 = vmatpush1.msra.mxu0 %v57
    %1702 = vmatprep.subr.mxu0 %v62
    %1703 = vmatpush1.msra.mxu0 %v61
    %1704 = vmatprep.subr.mxu0 %v66
    %1705 = vmatpush1.msra.mxu0 %v65
    %1706 = vmatprep.subr.mxu0 %v70
    %1707 = vmatpush1.msra.mxu0 %v69
    %1708 = vmatprep.subr.mxu0 %v74
    %1709 = vmatpush1.msra.mxu0 %v73
    %1710 = vmatprep.subr.mxu0 %v78
    %1711 = vmatpush1.msra.mxu0 %v77
    %1712 = vmatprep.subr.mxu0 %v82
    %1713 = vmatpush1.msra.mxu0 %v81
    %1714 = vmatprep.subr.mxu0 %v86
    %1715 = vmatpush1.msra.mxu0 %v85
    %1716 = vmatprep.subr.mxu0 %v90
    %1717 = vmatpush1.msra.mxu0 %v89
    %1718 = vmatprep.subr.mxu0 %v94
    %1719 = vmatpush1.msra.mxu0 %v93
    %1720 = vmatprep.subr.mxu0 %v98
    %1721 = vmatpush1.msra.mxu0 %v97
    %1722 = vmatprep.subr.mxu0 %v102
    %1723 = vmatpush1.msra.mxu0 %v101
    %1724 = vmatprep.subr.mxu0 %v106
    %1725 = vmatpush1.msra.mxu0 %v105
    %1726 = vmatprep.subr.mxu0 %v110
    %1727 = vmatpush1.msra.mxu0 %v109
    %1728 = vmatprep.subr.mxu0 0.0
    %1729 = vmatpush1.msra.mxu0 0.0
    %1730 = vmatprep.subr.mxu0 0.0
    %1731 = vmatpush1.msra.mxu0 0.0
    %1732 = vmatprep.subr.mxu0 0.0
    %1733 = vmatpush1.msra.mxu0 0.0
    %1734 = vmatprep.subr.mxu0 0.0
    %1735 = vmatpush1.msra.mxu0 0.0
    %1736 = vmatprep.subr.mxu0 0.0
    %1737 = vmatpush1.msra.mxu0 0.0
    %1738 = vmatprep.subr.mxu0 0.0
    %1739 = vmatpush1.msra.mxu0 0.0
    %1740 = vmatprep.subr.mxu0 0.0
    %1741 = vmatpush1.msra.mxu0 0.0
    %1742 = vmatprep.subr.mxu0 0.0
    %1743 = vmatpush1.msra.mxu0 0.0
    %1744 = vmatprep.subr.mxu0 0.0
    %1745 = vmatpush1.msra.mxu0 0.0
    %1746 = vmatprep.subr.mxu0 0.0
    %1747 = vmatpush1.msra.mxu0 0.0
    %1748 = vmatprep.subr.mxu0 0.0
    %1749 = vmatpush1.msra.mxu0 0.0
    %1750 = vmatprep.subr.mxu0 0.0
    %1751 = vmatpush1.msra.mxu0 0.0
    %1752 = vmatprep.subr.mxu0 0.0
    %1753 = vmatpush1.msra.mxu0 0.0
    %1754 = vmatprep.subr.mxu0 0.0
    %1755 = vmatpush1.msra.mxu0 0.0
    %1756 = vmatprep.subr.mxu0 0.0
    %1757 = vmatpush1.msra.mxu0 0.0
    %1758 = vmatprep.subr.mxu0 0.0
    %1759 = vmatpush1.msra.mxu0 0.0
    %1760 = vmatprep.mubr.f32.mxu0 0.0
    %1761 = vmatmul.mubr.f32.gmra.mrb[0].mxu0 %v1624
    %v1762 = vpop.f32.mrb[0].mxu0
    %v1763 = vadd.f32 0.0, %v1762
    %v1764 = vpop.f32.mrb[0].mxu0
    %v1765 = vadd.f32 0.0, %v1764
    %1766 = vdwg.mxu0
    %v1767 = vadd.f32 %v288, %v1692
    %v1768 = vadd.f32 %v290, %v1694
    %v1769 = vadd.f32 %v401, %v1763
    %v1770 = vadd.f32 %v403, %v1765
    %v1771 = vadd.f32 %v1767, %v116
    %v1772 = vadd.f32 %v1768, %v120
    %v1773 = vadd.f32 %v1769, %v124
    %v1774 = vadd.f32 %v1770, %v128
    %v1775 = vxor.u32 %v1771, 2147483648
    %v1776 = vmul.f32 %v1775, 1.442695
    %v1777 = vpow.pop %v1776
    %v1778 = vadd.f32 %v1777, 1.0
    %v1779 = vrcp.pop %v1778
    %v1780 = vmul.f32 1.0, %v1779
    %v1781 = vxor.u32 %v1772, 2147483648
    %v1782 = vmul.f32 %v1781, 1.442695
    %v1783 = vpow.pop %v1782
    %v1784 = vadd.f32 %v1783, 1.0
    %v1785 = vrcp.pop %v1784
    %v1786 = vmul.f32 1.0, %v1785
    %v1787 = vtanh.pop %v1773
    %v1788 = vxor.u32 %v1774, 2147483648
    %v1789 = vmul.f32 %v1788, 1.442695
    %v1790 = vpow.pop %v1789
    %v1791 = vadd.f32 %v1790, 1.0
    %v1792 = vrcp.pop %v1791
    %v1793 = vmul.f32 1.0, %v1792
    %v1794 = vmul.f32 %v1786, %v1622
    %v1795 = vmul.f32 %v1780, %v1787
    %v1796 = vadd.f32 %v1794, %v1795
    %v1797 = vtanh.pop %v1796
    %v1798 = vmul.f32 %v1793, %v1797
    %1799 = vst [vmem:[#allocation2] sm:$0xff] %v1798
    %1800 = vst [vmem:[#allocation3] sm:$0xff] %v1796
    // Predicated region
    $region34: #{tpu_custom_call.1} parent=1 // pred_check
      %p1801 = pneg %p39
    $region35: #{tpu_custom_call.1} parent=1 // pred_check_branch
      %1803 = sbr.rel (%p1801) target = $region37
    $region36: #{tpu_custom_call.1} parent=1 // pred_region
      %v1804 = vld [vmem:[%s4] sm:$0x1]
      %v1806 = vlaneseq
      %v1807 = vshrl.u32 %v1806, 7
      %v1808 = vsub.s32 0, %v1807
      %v1809 = vrot.slane %v1804, %v1808
      %v1811 = vmul.f32 %v1798, %v1809
      %1812 = vadd.xlane.f32.xlu0 %v1811
      %v1813 = vpop.xlane.xlu0 %1812
      %v1814 = vld [vmem:[#allocation4] sm:$0x1]
      %v1816 = vlaneseq
      %v1817 = vshrl.u32 %v1816, 7
      %v1818 = vsub.s32 0, %v1817
      %v1819 = vrot.slane %v1814, %v1818
      %v1821 = vadd.f32 %v1813, %v1819
      %vm1822 = vcmask 7168
      %1823 = vst.msk [vmem:[%s6] sm:$0xff] %vm1822, %v1821
    $region37: #{tpu_custom_call.1} parent=1 // pred_fallthru
      _
    // Predicated region
    $region38: #{tpu_custom_call.1} parent=1 // pred_check
      _
    $region39: #{tpu_custom_call.1} parent=1 // pred_check_branch
      %1825 = sbr.rel (0) target = $region41
    $region40: #{tpu_custom_call.1} parent=1 // pred_region
      _
    $region41: #{tpu_custom_call.1} parent=1 // pred_fallthru
      _
    // Predicated region
    $region42: #{tpu_custom_call.1} parent=1 // pred_check
      _
    $region43: #{tpu_custom_call.1} parent=1 // pred_check_branch
      %1827 = sbr.rel (0) target = $region45
    $region44: #{tpu_custom_call.1} parent=1 // pred_region
      _
    $region45: #{tpu_custom_call.1} parent=1 // pred_fallthru
      _
    %1828 = vsyncpa [#allocation6], 1

</llo_original>
